<compile_context>
chip_gen: v7x
topology: tpu7x:2x2x1
jax: 0.10.0
libtpu: 0.0.40
codegen_flags: <defaults>
</compile_context>

<pallas_src>
import math

import jax
import jax.numpy as jnp
from jax import lax
from jax.experimental import pallas as pl
from jax.experimental.pallas import tpu as pltpu


def critic_kernel(xT_ref, w1_ref, b1_ref, w2_ref, b2_ref, w3r_ref, out_ref):
    """Fused conv1(3x1)+relu -> conv2(full temporal reduce)+relu -> layer3 column score.

    Per lane-block of N = B*M columns (column n = b*M + m on the 128-lane axis):
      xT_ref : (T-1, F, LB) bf16   x[:, :, 1:, :] re-laid out channels x columns
      w1_ref : (3, 16, F)   bf16   conv1 weight, temporal tap index leading
      b1_ref : (16, 1)      f32
      w2_ref : (t1, 32, 16) bf16   conv2 weight, temporal tap index leading
      b2_ref : (32, 1)      f32
      w3r_ref: (32, LB)     f32    layer3 weights for the 32 phi2 channels, lane-
                                   replicated with period M (LB % M == 0, resident)
      out_ref: (1, LB)      f32    lane-dense per-column score
                                   s[n] = sum_c phi2[c, n] * W3[c, n mod M]
    """
    t1 = w2_ref.shape[0]
    h2 = w1_ref.shape[1]
    h1 = w2_ref.shape[1]
    nb = xT_ref.shape[2]

    # Hoist bias broadcasts out of the tap loop (JAX does not CSE broadcast_in_dim).
    b1b = jnp.broadcast_to(b1_ref[...], (h2, nb))
    b2b = jnp.broadcast_to(b2_ref[...], (h1, nb))

    # conv1 taps formed in-kernel (no wrapper im2col); conv2 fused into the same loop
    # so phi1 never round-trips through VMEM.  z2 lives in f32 vregs.
    z2 = b2b                                                   # (32, LB)
    for t in range(t1):                                        # static unroll
        z1 = b1b
        for dt in range(3):                                    # 3 conv1 taps, K = F
            z1 = z1 + jnp.dot(w1_ref[dt], xT_ref[t + dt],
                              preferred_element_type=jnp.float32)
        phi1_t = jnp.maximum(z1, 0.0).astype(w2_ref.dtype)     # (16, LB) bf16
        z2 = z2 + jnp.dot(w2_ref[t], phi1_t,                   # conv2 accumulation
                          preferred_element_type=jnp.float32)
    phi2 = jnp.maximum(z2, 0.0)                                # (32, LB)

    # layer3 (per-column part): weighted channel reduce on VPU/XLU, not the MXU.
    out_ref[...] = jnp.sum(phi2 * w3r_ref[...], axis=0, keepdims=True)


def _cdiv(a, b):
    return -(-a // b)


def _choose_lane_block(N, M, max_lane_block, min_blocks=2):
    """Lanes per grid block: a multiple of both 128 (lane tile) and M (so one lane-
    replicated W3 tile serves every block), capped near max_lane_block, and split into
    >= min_blocks grid blocks when N is large enough (v7x megacore sharding)."""
    unit = (128 * M) // math.gcd(128, M)                 # lcm(128, M)
    total_units = _cdiv(N, unit)
    max_units_per_block = max(1, max_lane_block // unit)
    units_per_block = min(max_units_per_block, max(1, _cdiv(total_units, min_blocks)))
    lb = units_per_block * unit
    return lb, _cdiv(N, lb) * lb


def deterministic_critic_forward(x, action, params, *, max_lane_block=1024):
    """x: (B, F, T, M) NCHW f32, action: (B, M+1) f32.  Returns (B, 1) Q-values."""
    W1, b1, W2, b2, W3, b3 = params
    B, F, T, M = x.shape
    t1 = (T - 1) - 3 + 1            # conv1 temporal output length (= T - 3)
    # conv2 (kernel == stride == T - 3) fully reduces time to 1 by module construction.
    assert t1 >= 1 and action.shape == (B, M + 1), (T, action.shape)
    h2 = W1.shape[0]                # 16
    h1 = W2.shape[0]                # 32
    N = B * M

    # ---- layout glue (tiny; weight relayouts belong at parameter-update time) ----
    # xcT[t, f, n] = x[b, f, 1 + t, m] with column n = b*M + m on the lane axis.
    xc = x[:, :, 1:, :]                                                   # (B,F,T-1,M)
    xcT = jnp.transpose(xc, (2, 1, 0, 3)).reshape(T - 1, F, N).astype(jnp.bfloat16)

    W1t = jnp.transpose(W1[:, :, :, 0], (2, 0, 1)).astype(jnp.bfloat16)   # (3, 16, F)
    W2t = jnp.transpose(W2[:, :, :, 0], (2, 0, 1)).astype(jnp.bfloat16)   # (t1, 32, 16)
    b1c = b1.reshape(h2, 1).astype(jnp.float32)
    b2c = b2.reshape(h1, 1).astype(jnp.float32)

    LB, N_pad = _choose_lane_block(N, M, max_lane_block)
    if N_pad != N:
        # Padded lanes produce nonzero garbage scores (relu(bias) * W3); they are
        # sliced off below, before the per-batch reduction, so no in-kernel mask.
        xcT = jnp.pad(xcT, ((0, 0), (0, 0), (0, N_pad - N)))

    # layer3: h.view(B, -1) flattens channel-major, so weight index is c*M + m.
    W3c = W3.reshape(h1 + 2, M).astype(jnp.float32)   # rows: 32 phi2 ch, then w0, action
    w3rep = jnp.tile(W3c[:h1], (1, LB // M))          # (32, LB) single block-resident tile

    grid = (N_pad // LB,)
    score = pl.pallas_call(
        critic_kernel,
        out_shape=jax.ShapeDtypeStruct((1, N_pad), jnp.float32),
        grid_spec=pltpu.PrefetchScalarGridSpec(
            num_scalar_prefetch=0,
            grid=grid,
            in_specs=[
                pl.BlockSpec((T - 1, F, LB), lambda i: (0, 0, i)),   # x: only per-N stream
                pl.BlockSpec((3, h2, F), lambda i: (0, 0, 0)),       # conv1 W (resident)
                pl.BlockSpec((h2, 1), lambda i: (0, 0)),             # conv1 b
                pl.BlockSpec((t1, h1, h2), lambda i: (0, 0, 0)),     # conv2 W (resident)
                pl.BlockSpec((h1, 1), lambda i: (0, 0)),             # conv2 b
                pl.BlockSpec((h1, LB), lambda i: (0, 0)),            # W3 lane-replicated
            ],
            out_specs=pl.BlockSpec((1, LB), lambda i: (0, i)),
        ),
        compiler_params=pltpu.CompilerParams(
            dimension_semantics=("parallel",)),
    )(xcT, W1t, b1c, W2t, b2c, w3rep)

    # layer3 pieces independent of the conv path (tiny, plain JAX): per-batch sum of
    # the per-column scores over the M assets, plus the w0 / action channels and bias.
    s_phi = score[0, :N].reshape(B, M).sum(axis=1)
    s_w0 = (x[:, 0, 0, :] * W3c[h1][None, :]).sum(axis=1)
    s_act = (action[:, :-1] * W3c[h1 + 1][None, :]).sum(axis=1)
    return (s_phi + s_w0 + s_act)[:, None] + b3.reshape(1, 1)


def ref_forward(x, action, params):
    """Pure-JAX f32 reference mirroring the PyTorch forward exactly."""
    W1, b1, W2, b2, W3, b3 = params
    B = x.shape[0]
    T = x.shape[2]
    stride_time = T - 1 - 2
    dn = ('NCHW', 'OIHW', 'NCHW')
    hi = lax.Precision.HIGHEST

    a = action[:, None, None, :-1]
    w0 = x[:, :1, :1, :]
    xc = x[:, :, 1:, :]
    phi1 = jax.nn.relu(
        lax.conv_general_dilated(xc, W1, (1, 1), 'VALID',
                                 dimension_numbers=dn, precision=hi)
        + b1[None, :, None, None])
    phi2 = jax.nn.relu(
        lax.conv_general_dilated(phi1, W2, (stride_time, 1), 'VALID',
                                 dimension_numbers=dn, precision=hi)
        + b2[None, :, None, None])
    h = jnp.concatenate([phi2, w0, a], axis=1)               # (B, 34, 1, M)
    hflat = h.reshape(B, -1)
    return jnp.dot(hflat, W3.T, precision=hi) + b3[None, :]  # (B, 1)


if __name__ == "__main__":
    # Small shapes consistent with the module: state_dim = (F, T, M), action_dim = M+1.
    B, F, T, M = 2, 4, 8, 16
    stride_time = T - 1 - 2       # = 5
    H2, H1 = 16, 32

    key = jax.random.PRNGKey(0)
    ks = jax.random.split(key, 8)
    x = jax.random.normal(ks[0], (B, F, T, M), jnp.float32)
    action = jax.random.normal(ks[1], (B, M + 1), jnp.float32)
    W1 = 0.1 * jax.random.normal(ks[2], (H2, F, 3, 1), jnp.float32)
    b1 = 0.01 * jax.random.normal(ks[3], (H2,), jnp.float32)
    W2 = 0.1 * jax.random.normal(ks[4], (H1, H2, stride_time, 1), jnp.float32)
    b2 = 0.01 * jax.random.normal(ks[5], (H1,), jnp.float32)
    W3 = 0.1 * jax.random.normal(ks[6], (1, (H1 + 2) * M), jnp.float32)
    b3 = 0.01 * jax.random.normal(ks[7], (1,), jnp.float32)
    params = (W1, b1, W2, b2, W3, b3)

    out = jax.block_until_ready(deterministic_critic_forward(x, action, params))
    ref = jax.block_until_ready(ref_forward(x, action, params))

    assert out.shape == (B, 1), out.shape
    # Kernel runs the conv path in bf16 (f32 accumulation) per the perf review; the
    # reference is f32 HIGHEST, so the tolerance is relaxed from 1e-4 to 2e-2.
    if not bool(jnp.allclose(out, ref, rtol=2e-2, atol=2e-2)):
        raise AssertionError(f"mismatch: max abs diff = {jnp.max(jnp.abs(out - ref))}")
    print("KERNEL_OK")
</pallas_src>

<mosaic_0001>
module attributes {stable_mosaic.version = 11 : i64} {
  func.func @critic_kernel(%arg0: i32, %arg1: memref<7x4x128xbf16, #tpu.memory_space<vmem>>, %arg2: memref<3x16x4xbf16, #tpu.memory_space<vmem>>, %arg3: memref<16x1xf32, #tpu.memory_space<vmem>>, %arg4: memref<5x32x16xbf16, #tpu.memory_space<vmem>>, %arg5: memref<32x1xf32, #tpu.memory_space<vmem>>, %arg6: memref<32x128xf32, #tpu.memory_space<vmem>>, %arg7: memref<1x128xf32, #tpu.memory_space<vmem>>) attributes {dimension_semantics = [#tpu.dimension_semantics<parallel>], iteration_bounds = array<i64: 1>, scalar_prefetch = 0 : i64, scratch_operands = 0 : i64, tpu.core_type = #tpu.core_type<tc>, window_params = [{transform_indices = @transform_0, window_bounds = array<i64: 7, 4, 128>}, {pipeline_mode = #tpu.pipeline_mode<synchronous>, transform_indices = @transform_1, window_bounds = array<i64: 3, 16, 4>}, {pipeline_mode = #tpu.pipeline_mode<synchronous>, transform_indices = @transform_2, window_bounds = array<i64: 16, 1>}, {pipeline_mode = #tpu.pipeline_mode<synchronous>, transform_indices = @transform_3, window_bounds = array<i64: 5, 32, 16>}, {pipeline_mode = #tpu.pipeline_mode<synchronous>, transform_indices = @transform_4, window_bounds = array<i64: 32, 1>}, {pipeline_mode = #tpu.pipeline_mode<synchronous>, transform_indices = @transform_5, window_bounds = array<i64: 32, 128>}, {transform_indices = @transform_6, window_bounds = array<i64: 1, 128>}]} {
    %c0 = arith.constant 0 : index
    %c0_0 = arith.constant 0 : index
    %0 = vector.load %arg3[%c0, %c0_0] : memref<16x1xf32, #tpu.memory_space<vmem>>, vector<16x1xf32>
    %1 = vector.shape_cast %0 : vector<16x1xf32> to vector<16x1xf32>
    %2 = vector.broadcast %1 : vector<16x1xf32> to vector<16x128xf32>
    %c0_1 = arith.constant 0 : index
    %c0_2 = arith.constant 0 : index
    %3 = vector.load %arg5[%c0_1, %c0_2] : memref<32x1xf32, #tpu.memory_space<vmem>>, vector<32x1xf32>
    %4 = vector.shape_cast %3 : vector<32x1xf32> to vector<32x1xf32>
    %5 = vector.broadcast %4 : vector<32x1xf32> to vector<32x128xf32>
    %c0_3 = arith.constant 0 : index
    %c0_4 = arith.constant 0 : index
    %c0_5 = arith.constant 0 : index
    %6 = vector.load %arg2[%c0_3, %c0_4, %c0_5] : memref<3x16x4xbf16, #tpu.memory_space<vmem>>, vector<1x16x4xbf16>
    %7 = vector.shape_cast %6 : vector<1x16x4xbf16> to vector<16x4xbf16>
    %c0_6 = arith.constant 0 : index
    %c0_7 = arith.constant 0 : index
    %c0_8 = arith.constant 0 : index
    %8 = vector.load %arg1[%c0_6, %c0_7, %c0_8] : memref<7x4x128xbf16, #tpu.memory_space<vmem>>, vector<1x4x128xbf16>
    %9 = vector.shape_cast %8 : vector<1x4x128xbf16> to vector<4x128xbf16>
    %cst = arith.constant dense<0.000000e+00> : vector<16x128xf32>
    %10 = tpu.matmul %7, %9, %cst {dimension_numbers = #tpu.dot_dimension_numbers<[1], [0], [0], [1], [0, 0, 1, 1], [], []>} : vector<16x4xbf16>, vector<4x128xbf16>, vector<16x128xf32> -> vector<16x128xf32>
    %11 = arith.addf %2, %10 : vector<16x128xf32>
    %c1 = arith.constant 1 : index
    %c0_9 = arith.constant 0 : index
    %c0_10 = arith.constant 0 : index
    %12 = vector.load %arg2[%c1, %c0_9, %c0_10] : memref<3x16x4xbf16, #tpu.memory_space<vmem>>, vector<1x16x4xbf16>
    %13 = vector.shape_cast %12 : vector<1x16x4xbf16> to vector<16x4xbf16>
    %c1_11 = arith.constant 1 : index
    %c0_12 = arith.constant 0 : index
    %c0_13 = arith.constant 0 : index
    %14 = vector.load %arg1[%c1_11, %c0_12, %c0_13] : memref<7x4x128xbf16, #tpu.memory_space<vmem>>, vector<1x4x128xbf16>
    %15 = vector.shape_cast %14 : vector<1x4x128xbf16> to vector<4x128xbf16>
    %cst_14 = arith.constant dense<0.000000e+00> : vector<16x128xf32>
    %16 = tpu.matmul %13, %15, %cst_14 {dimension_numbers = #tpu.dot_dimension_numbers<[1], [0], [0], [1], [0, 0, 1, 1], [], []>} : vector<16x4xbf16>, vector<4x128xbf16>, vector<16x128xf32> -> vector<16x128xf32>
    %17 = arith.addf %11, %16 : vector<16x128xf32>
    %c2 = arith.constant 2 : index
    %c0_15 = arith.constant 0 : index
    %c0_16 = arith.constant 0 : index
    %18 = vector.load %arg2[%c2, %c0_15, %c0_16] : memref<3x16x4xbf16, #tpu.memory_space<vmem>>, vector<1x16x4xbf16>
    %19 = vector.shape_cast %18 : vector<1x16x4xbf16> to vector<16x4xbf16>
    %c2_17 = arith.constant 2 : index
    %c0_18 = arith.constant 0 : index
    %c0_19 = arith.constant 0 : index
    %20 = vector.load %arg1[%c2_17, %c0_18, %c0_19] : memref<7x4x128xbf16, #tpu.memory_space<vmem>>, vector<1x4x128xbf16>
    %21 = vector.shape_cast %20 : vector<1x4x128xbf16> to vector<4x128xbf16>
    %cst_20 = arith.constant dense<0.000000e+00> : vector<16x128xf32>
    %22 = tpu.matmul %19, %21, %cst_20 {dimension_numbers = #tpu.dot_dimension_numbers<[1], [0], [0], [1], [0, 0, 1, 1], [], []>} : vector<16x4xbf16>, vector<4x128xbf16>, vector<16x128xf32> -> vector<16x128xf32>
    %23 = arith.addf %17, %22 : vector<16x128xf32>
    %cst_21 = arith.constant 0.000000e+00 : f32
    %24 = vector.broadcast %cst_21 : f32 to vector<16x128xf32>
    %25 = arith.maximumf %23, %24 : vector<16x128xf32>
    %26 = arith.truncf %25 : vector<16x128xf32> to vector<16x128xbf16>
    %c0_22 = arith.constant 0 : index
    %c0_23 = arith.constant 0 : index
    %c0_24 = arith.constant 0 : index
    %27 = vector.load %arg4[%c0_22, %c0_23, %c0_24] : memref<5x32x16xbf16, #tpu.memory_space<vmem>>, vector<1x32x16xbf16>
    %28 = vector.shape_cast %27 : vector<1x32x16xbf16> to vector<32x16xbf16>
    %cst_25 = arith.constant dense<0.000000e+00> : vector<32x128xf32>
    %29 = tpu.matmul %28, %26, %cst_25 {dimension_numbers = #tpu.dot_dimension_numbers<[1], [0], [0], [1], [0, 0, 1, 1], [], []>} : vector<32x16xbf16>, vector<16x128xbf16>, vector<32x128xf32> -> vector<32x128xf32>
    %30 = arith.addf %5, %29 : vector<32x128xf32>
    %c0_26 = arith.constant 0 : index
    %c0_27 = arith.constant 0 : index
    %c0_28 = arith.constant 0 : index
    %31 = vector.load %arg2[%c0_26, %c0_27, %c0_28] : memref<3x16x4xbf16, #tpu.memory_space<vmem>>, vector<1x16x4xbf16>
    %32 = vector.shape_cast %31 : vector<1x16x4xbf16> to vector<16x4xbf16>
    %c1_29 = arith.constant 1 : index
    %c0_30 = arith.constant 0 : index
    %c0_31 = arith.constant 0 : index
    %33 = vector.load %arg1[%c1_29, %c0_30, %c0_31] : memref<7x4x128xbf16, #tpu.memory_space<vmem>>, vector<1x4x128xbf16>
    %34 = vector.shape_cast %33 : vector<1x4x128xbf16> to vector<4x128xbf16>
    %cst_32 = arith.constant dense<0.000000e+00> : vector<16x128xf32>
    %35 = tpu.matmul %32, %34, %cst_32 {dimension_numbers = #tpu.dot_dimension_numbers<[1], [0], [0], [1], [0, 0, 1, 1], [], []>} : vector<16x4xbf16>, vector<4x128xbf16>, vector<16x128xf32> -> vector<16x128xf32>
    %36 = arith.addf %2, %35 : vector<16x128xf32>
    %c1_33 = arith.constant 1 : index
    %c0_34 = arith.constant 0 : index
    %c0_35 = arith.constant 0 : index
    %37 = vector.load %arg2[%c1_33, %c0_34, %c0_35] : memref<3x16x4xbf16, #tpu.memory_space<vmem>>, vector<1x16x4xbf16>
    %38 = vector.shape_cast %37 : vector<1x16x4xbf16> to vector<16x4xbf16>
    %c2_36 = arith.constant 2 : index
    %c0_37 = arith.constant 0 : index
    %c0_38 = arith.constant 0 : index
    %39 = vector.load %arg1[%c2_36, %c0_37, %c0_38] : memref<7x4x128xbf16, #tpu.memory_space<vmem>>, vector<1x4x128xbf16>
    %40 = vector.shape_cast %39 : vector<1x4x128xbf16> to vector<4x128xbf16>
    %cst_39 = arith.constant dense<0.000000e+00> : vector<16x128xf32>
    %41 = tpu.matmul %38, %40, %cst_39 {dimension_numbers = #tpu.dot_dimension_numbers<[1], [0], [0], [1], [0, 0, 1, 1], [], []>} : vector<16x4xbf16>, vector<4x128xbf16>, vector<16x128xf32> -> vector<16x128xf32>
    %42 = arith.addf %36, %41 : vector<16x128xf32>
    %c2_40 = arith.constant 2 : index
    %c0_41 = arith.constant 0 : index
    %c0_42 = arith.constant 0 : index
    %43 = vector.load %arg2[%c2_40, %c0_41, %c0_42] : memref<3x16x4xbf16, #tpu.memory_space<vmem>>, vector<1x16x4xbf16>
    %44 = vector.shape_cast %43 : vector<1x16x4xbf16> to vector<16x4xbf16>
    %c3 = arith.constant 3 : index
    %c0_43 = arith.constant 0 : index
    %c0_44 = arith.constant 0 : index
    %45 = vector.load %arg1[%c3, %c0_43, %c0_44] : memref<7x4x128xbf16, #tpu.memory_space<vmem>>, vector<1x4x128xbf16>
    %46 = vector.shape_cast %45 : vector<1x4x128xbf16> to vector<4x128xbf16>
    %cst_45 = arith.constant dense<0.000000e+00> : vector<16x128xf32>
    %47 = tpu.matmul %44, %46, %cst_45 {dimension_numbers = #tpu.dot_dimension_numbers<[1], [0], [0], [1], [0, 0, 1, 1], [], []>} : vector<16x4xbf16>, vector<4x128xbf16>, vector<16x128xf32> -> vector<16x128xf32>
    %48 = arith.addf %42, %47 : vector<16x128xf32>
    %cst_46 = arith.constant 0.000000e+00 : f32
    %49 = vector.broadcast %cst_46 : f32 to vector<16x128xf32>
    %50 = arith.maximumf %48, %49 : vector<16x128xf32>
    %51 = arith.truncf %50 : vector<16x128xf32> to vector<16x128xbf16>
    %c1_47 = arith.constant 1 : index
    %c0_48 = arith.constant 0 : index
    %c0_49 = arith.constant 0 : index
    %52 = vector.load %arg4[%c1_47, %c0_48, %c0_49] : memref<5x32x16xbf16, #tpu.memory_space<vmem>>, vector<1x32x16xbf16>
    %53 = vector.shape_cast %52 : vector<1x32x16xbf16> to vector<32x16xbf16>
    %cst_50 = arith.constant dense<0.000000e+00> : vector<32x128xf32>
    %54 = tpu.matmul %53, %51, %cst_50 {dimension_numbers = #tpu.dot_dimension_numbers<[1], [0], [0], [1], [0, 0, 1, 1], [], []>} : vector<32x16xbf16>, vector<16x128xbf16>, vector<32x128xf32> -> vector<32x128xf32>
    %55 = arith.addf %30, %54 : vector<32x128xf32>
    %c0_51 = arith.constant 0 : index
    %c0_52 = arith.constant 0 : index
    %c0_53 = arith.constant 0 : index
    %56 = vector.load %arg2[%c0_51, %c0_52, %c0_53] : memref<3x16x4xbf16, #tpu.memory_space<vmem>>, vector<1x16x4xbf16>
    %57 = vector.shape_cast %56 : vector<1x16x4xbf16> to vector<16x4xbf16>
    %c2_54 = arith.constant 2 : index
    %c0_55 = arith.constant 0 : index
    %c0_56 = arith.constant 0 : index
    %58 = vector.load %arg1[%c2_54, %c0_55, %c0_56] : memref<7x4x128xbf16, #tpu.memory_space<vmem>>, vector<1x4x128xbf16>
    %59 = vector.shape_cast %58 : vector<1x4x128xbf16> to vector<4x128xbf16>
    %cst_57 = arith.constant dense<0.000000e+00> : vector<16x128xf32>
    %60 = tpu.matmul %57, %59, %cst_57 {dimension_numbers = #tpu.dot_dimension_numbers<[1], [0], [0], [1], [0, 0, 1, 1], [], []>} : vector<16x4xbf16>, vector<4x128xbf16>, vector<16x128xf32> -> vector<16x128xf32>
    %61 = arith.addf %2, %60 : vector<16x128xf32>
    %c1_58 = arith.constant 1 : index
    %c0_59 = arith.constant 0 : index
    %c0_60 = arith.constant 0 : index
    %62 = vector.load %arg2[%c1_58, %c0_59, %c0_60] : memref<3x16x4xbf16, #tpu.memory_space<vmem>>, vector<1x16x4xbf16>
    %63 = vector.shape_cast %62 : vector<1x16x4xbf16> to vector<16x4xbf16>
    %c3_61 = arith.constant 3 : index
    %c0_62 = arith.constant 0 : index
    %c0_63 = arith.constant 0 : index
    %64 = vector.load %arg1[%c3_61, %c0_62, %c0_63] : memref<7x4x128xbf16, #tpu.memory_space<vmem>>, vector<1x4x128xbf16>
    %65 = vector.shape_cast %64 : vector<1x4x128xbf16> to vector<4x128xbf16>
    %cst_64 = arith.constant dense<0.000000e+00> : vector<16x128xf32>
    %66 = tpu.matmul %63, %65, %cst_64 {dimension_numbers = #tpu.dot_dimension_numbers<[1], [0], [0], [1], [0, 0, 1, 1], [], []>} : vector<16x4xbf16>, vector<4x128xbf16>, vector<16x128xf32> -> vector<16x128xf32>
    %67 = arith.addf %61, %66 : vector<16x128xf32>
    %c2_65 = arith.constant 2 : index
    %c0_66 = arith.constant 0 : index
    %c0_67 = arith.constant 0 : index
    %68 = vector.load %arg2[%c2_65, %c0_66, %c0_67] : memref<3x16x4xbf16, #tpu.memory_space<vmem>>, vector<1x16x4xbf16>
    %69 = vector.shape_cast %68 : vector<1x16x4xbf16> to vector<16x4xbf16>
    %c4 = arith.constant 4 : index
    %c0_68 = arith.constant 0 : index
    %c0_69 = arith.constant 0 : index
    %70 = vector.load %arg1[%c4, %c0_68, %c0_69] : memref<7x4x128xbf16, #tpu.memory_space<vmem>>, vector<1x4x128xbf16>
    %71 = vector.shape_cast %70 : vector<1x4x128xbf16> to vector<4x128xbf16>
    %cst_70 = arith.constant dense<0.000000e+00> : vector<16x128xf32>
    %72 = tpu.matmul %69, %71, %cst_70 {dimension_numbers = #tpu.dot_dimension_numbers<[1], [0], [0], [1], [0, 0, 1, 1], [], []>} : vector<16x4xbf16>, vector<4x128xbf16>, vector<16x128xf32> -> vector<16x128xf32>
    %73 = arith.addf %67, %72 : vector<16x128xf32>
    %cst_71 = arith.constant 0.000000e+00 : f32
    %74 = vector.broadcast %cst_71 : f32 to vector<16x128xf32>
    %75 = arith.maximumf %73, %74 : vector<16x128xf32>
    %76 = arith.truncf %75 : vector<16x128xf32> to vector<16x128xbf16>
    %c2_72 = arith.constant 2 : index
    %c0_73 = arith.constant 0 : index
    %c0_74 = arith.constant 0 : index
    %77 = vector.load %arg4[%c2_72, %c0_73, %c0_74] : memref<5x32x16xbf16, #tpu.memory_space<vmem>>, vector<1x32x16xbf16>
    %78 = vector.shape_cast %77 : vector<1x32x16xbf16> to vector<32x16xbf16>
    %cst_75 = arith.constant dense<0.000000e+00> : vector<32x128xf32>
    %79 = tpu.matmul %78, %76, %cst_75 {dimension_numbers = #tpu.dot_dimension_numbers<[1], [0], [0], [1], [0, 0, 1, 1], [], []>} : vector<32x16xbf16>, vector<16x128xbf16>, vector<32x128xf32> -> vector<32x128xf32>
    %80 = arith.addf %55, %79 : vector<32x128xf32>
    %c0_76 = arith.constant 0 : index
    %c0_77 = arith.constant 0 : index
    %c0_78 = arith.constant 0 : index
    %81 = vector.load %arg2[%c0_76, %c0_77, %c0_78] : memref<3x16x4xbf16, #tpu.memory_space<vmem>>, vector<1x16x4xbf16>
    %82 = vector.shape_cast %81 : vector<1x16x4xbf16> to vector<16x4xbf16>
    %c3_79 = arith.constant 3 : index
    %c0_80 = arith.constant 0 : index
    %c0_81 = arith.constant 0 : index
    %83 = vector.load %arg1[%c3_79, %c0_80, %c0_81] : memref<7x4x128xbf16, #tpu.memory_space<vmem>>, vector<1x4x128xbf16>
    %84 = vector.shape_cast %83 : vector<1x4x128xbf16> to vector<4x128xbf16>
    %cst_82 = arith.constant dense<0.000000e+00> : vector<16x128xf32>
    %85 = tpu.matmul %82, %84, %cst_82 {dimension_numbers = #tpu.dot_dimension_numbers<[1], [0], [0], [1], [0, 0, 1, 1], [], []>} : vector<16x4xbf16>, vector<4x128xbf16>, vector<16x128xf32> -> vector<16x128xf32>
    %86 = arith.addf %2, %85 : vector<16x128xf32>
    %c1_83 = arith.constant 1 : index
    %c0_84 = arith.constant 0 : index
    %c0_85 = arith.constant 0 : index
    %87 = vector.load %arg2[%c1_83, %c0_84, %c0_85] : memref<3x16x4xbf16, #tpu.memory_space<vmem>>, vector<1x16x4xbf16>
    %88 = vector.shape_cast %87 : vector<1x16x4xbf16> to vector<16x4xbf16>
    %c4_86 = arith.constant 4 : index
    %c0_87 = arith.constant 0 : index
    %c0_88 = arith.constant 0 : index
    %89 = vector.load %arg1[%c4_86, %c0_87, %c0_88] : memref<7x4x128xbf16, #tpu.memory_space<vmem>>, vector<1x4x128xbf16>
    %90 = vector.shape_cast %89 : vector<1x4x128xbf16> to vector<4x128xbf16>
    %cst_89 = arith.constant dense<0.000000e+00> : vector<16x128xf32>
    %91 = tpu.matmul %88, %90, %cst_89 {dimension_numbers = #tpu.dot_dimension_numbers<[1], [0], [0], [1], [0, 0, 1, 1], [], []>} : vector<16x4xbf16>, vector<4x128xbf16>, vector<16x128xf32> -> vector<16x128xf32>
    %92 = arith.addf %86, %91 : vector<16x128xf32>
    %c2_90 = arith.constant 2 : index
    %c0_91 = arith.constant 0 : index
    %c0_92 = arith.constant 0 : index
    %93 = vector.load %arg2[%c2_90, %c0_91, %c0_92] : memref<3x16x4xbf16, #tpu.memory_space<vmem>>, vector<1x16x4xbf16>
    %94 = vector.shape_cast %93 : vector<1x16x4xbf16> to vector<16x4xbf16>
    %c5 = arith.constant 5 : index
    %c0_93 = arith.constant 0 : index
    %c0_94 = arith.constant 0 : index
    %95 = vector.load %arg1[%c5, %c0_93, %c0_94] : memref<7x4x128xbf16, #tpu.memory_space<vmem>>, vector<1x4x128xbf16>
    %96 = vector.shape_cast %95 : vector<1x4x128xbf16> to vector<4x128xbf16>
    %cst_95 = arith.constant dense<0.000000e+00> : vector<16x128xf32>
    %97 = tpu.matmul %94, %96, %cst_95 {dimension_numbers = #tpu.dot_dimension_numbers<[1], [0], [0], [1], [0, 0, 1, 1], [], []>} : vector<16x4xbf16>, vector<4x128xbf16>, vector<16x128xf32> -> vector<16x128xf32>
    %98 = arith.addf %92, %97 : vector<16x128xf32>
    %cst_96 = arith.constant 0.000000e+00 : f32
    %99 = vector.broadcast %cst_96 : f32 to vector<16x128xf32>
    %100 = arith.maximumf %98, %99 : vector<16x128xf32>
    %101 = arith.truncf %100 : vector<16x128xf32> to vector<16x128xbf16>
    %c3_97 = arith.constant 3 : index
    %c0_98 = arith.constant 0 : index
    %c0_99 = arith.constant 0 : index
    %102 = vector.load %arg4[%c3_97, %c0_98, %c0_99] : memref<5x32x16xbf16, #tpu.memory_space<vmem>>, vector<1x32x16xbf16>
    %103 = vector.shape_cast %102 : vector<1x32x16xbf16> to vector<32x16xbf16>
    %cst_100 = arith.constant dense<0.000000e+00> : vector<32x128xf32>
    %104 = tpu.matmul %103, %101, %cst_100 {dimension_numbers = #tpu.dot_dimension_numbers<[1], [0], [0], [1], [0, 0, 1, 1], [], []>} : vector<32x16xbf16>, vector<16x128xbf16>, vector<32x128xf32> -> vector<32x128xf32>
    %105 = arith.addf %80, %104 : vector<32x128xf32>
    %c0_101 = arith.constant 0 : index
    %c0_102 = arith.constant 0 : index
    %c0_103 = arith.constant 0 : index
    %106 = vector.load %arg2[%c0_101, %c0_102, %c0_103] : memref<3x16x4xbf16, #tpu.memory_space<vmem>>, vector<1x16x4xbf16>
    %107 = vector.shape_cast %106 : vector<1x16x4xbf16> to vector<16x4xbf16>
    %c4_104 = arith.constant 4 : index
    %c0_105 = arith.constant 0 : index
    %c0_106 = arith.constant 0 : index
    %108 = vector.load %arg1[%c4_104, %c0_105, %c0_106] : memref<7x4x128xbf16, #tpu.memory_space<vmem>>, vector<1x4x128xbf16>
    %109 = vector.shape_cast %108 : vector<1x4x128xbf16> to vector<4x128xbf16>
    %cst_107 = arith.constant dense<0.000000e+00> : vector<16x128xf32>
    %110 = tpu.matmul %107, %109, %cst_107 {dimension_numbers = #tpu.dot_dimension_numbers<[1], [0], [0], [1], [0, 0, 1, 1], [], []>} : vector<16x4xbf16>, vector<4x128xbf16>, vector<16x128xf32> -> vector<16x128xf32>
    %111 = arith.addf %2, %110 : vector<16x128xf32>
    %c1_108 = arith.constant 1 : index
    %c0_109 = arith.constant 0 : index
    %c0_110 = arith.constant 0 : index
    %112 = vector.load %arg2[%c1_108, %c0_109, %c0_110] : memref<3x16x4xbf16, #tpu.memory_space<vmem>>, vector<1x16x4xbf16>
    %113 = vector.shape_cast %112 : vector<1x16x4xbf16> to vector<16x4xbf16>
    %c5_111 = arith.constant 5 : index
    %c0_112 = arith.constant 0 : index
    %c0_113 = arith.constant 0 : index
    %114 = vector.load %arg1[%c5_111, %c0_112, %c0_113] : memref<7x4x128xbf16, #tpu.memory_space<vmem>>, vector<1x4x128xbf16>
    %115 = vector.shape_cast %114 : vector<1x4x128xbf16> to vector<4x128xbf16>
    %cst_114 = arith.constant dense<0.000000e+00> : vector<16x128xf32>
    %116 = tpu.matmul %113, %115, %cst_114 {dimension_numbers = #tpu.dot_dimension_numbers<[1], [0], [0], [1], [0, 0, 1, 1], [], []>} : vector<16x4xbf16>, vector<4x128xbf16>, vector<16x128xf32> -> vector<16x128xf32>
    %117 = arith.addf %111, %116 : vector<16x128xf32>
    %c2_115 = arith.constant 2 : index
    %c0_116 = arith.constant 0 : index
    %c0_117 = arith.constant 0 : index
    %118 = vector.load %arg2[%c2_115, %c0_116, %c0_117] : memref<3x16x4xbf16, #tpu.memory_space<vmem>>, vector<1x16x4xbf16>
    %119 = vector.shape_cast %118 : vector<1x16x4xbf16> to vector<16x4xbf16>
    %c6 = arith.constant 6 : index
    %c0_118 = arith.constant 0 : index
    %c0_119 = arith.constant 0 : index
    %120 = vector.load %arg1[%c6, %c0_118, %c0_119] : memref<7x4x128xbf16, #tpu.memory_space<vmem>>, vector<1x4x128xbf16>
    %121 = vector.shape_cast %120 : vector<1x4x128xbf16> to vector<4x128xbf16>
    %cst_120 = arith.constant dense<0.000000e+00> : vector<16x128xf32>
    %122 = tpu.matmul %119, %121, %cst_120 {dimension_numbers = #tpu.dot_dimension_numbers<[1], [0], [0], [1], [0, 0, 1, 1], [], []>} : vector<16x4xbf16>, vector<4x128xbf16>, vector<16x128xf32> -> vector<16x128xf32>
    %123 = arith.addf %117, %122 : vector<16x128xf32>
    %cst_121 = arith.constant 0.000000e+00 : f32
    %124 = vector.broadcast %cst_121 : f32 to vector<16x128xf32>
    %125 = arith.maximumf %123, %124 : vector<16x128xf32>
    %126 = arith.truncf %125 : vector<16x128xf32> to vector<16x128xbf16>
    %c4_122 = arith.constant 4 : index
    %c0_123 = arith.constant 0 : index
    %c0_124 = arith.constant 0 : index
    %127 = vector.load %arg4[%c4_122, %c0_123, %c0_124] : memref<5x32x16xbf16, #tpu.memory_space<vmem>>, vector<1x32x16xbf16>
    %128 = vector.shape_cast %127 : vector<1x32x16xbf16> to vector<32x16xbf16>
    %cst_125 = arith.constant dense<0.000000e+00> : vector<32x128xf32>
    %129 = tpu.matmul %128, %126, %cst_125 {dimension_numbers = #tpu.dot_dimension_numbers<[1], [0], [0], [1], [0, 0, 1, 1], [], []>} : vector<32x16xbf16>, vector<16x128xbf16>, vector<32x128xf32> -> vector<32x128xf32>
    %130 = arith.addf %105, %129 : vector<32x128xf32>
    %cst_126 = arith.constant 0.000000e+00 : f32
    %131 = vector.broadcast %cst_126 : f32 to vector<32x128xf32>
    %132 = arith.maximumf %130, %131 : vector<32x128xf32>
    %c0_127 = arith.constant 0 : index
    %c0_128 = arith.constant 0 : index
    %133 = vector.load %arg6[%c0_127, %c0_128] : memref<32x128xf32, #tpu.memory_space<vmem>>, vector<32x128xf32>
    %134 = arith.mulf %132, %133 : vector<32x128xf32>
    %cst_129 = arith.constant dense<0.000000e+00> : vector<128xf32>
    %135 = vector.multi_reduction <add>, %134, %cst_129 [0] : vector<32x128xf32> to vector<128xf32>
    %136 = vector.shape_cast %135 : vector<128xf32> to vector<1x128xf32>
    %c0_130 = arith.constant 0 : index
    %c0_131 = arith.constant 0 : index
    %137 = vector.load %arg7[%c0_130, %c0_131] : memref<1x128xf32, #tpu.memory_space<vmem>>, vector<1x128xf32>
    tpu.vector_store %arg7[%c0_130, %c0_131], %136 {strides = array<i32>} : memref<1x128xf32, #tpu.memory_space<vmem>>, vector<1x128xf32>,
    return
  }
  func.func @transform_0(%arg0: i32) -> (i32, i32, i32) {
    %c0_i32 = arith.constant 0 : i32
    %c0_i32_0 = arith.constant 0 : i32
    %c0_i32_1 = arith.constant 0 : i32
    return %c0_i32, %c0_i32_0, %arg0 : i32, i32, i32
  }
  func.func @transform_1(%arg0: i32) -> (i32, i32, i32) {
    %c0_i32 = arith.constant 0 : i32
    %c0_i32_0 = arith.constant 0 : i32
    %c0_i32_1 = arith.constant 0 : i32
    %c0_i32_2 = arith.constant 0 : i32
    return %c0_i32, %c0_i32_0, %c0_i32_1 : i32, i32, i32
  }
  func.func @transform_2(%arg0: i32) -> (i32, i32) {
    %c0_i32 = arith.constant 0 : i32
    %c0_i32_0 = arith.constant 0 : i32
    %c0_i32_1 = arith.constant 0 : i32
    return %c0_i32, %c0_i32_0 : i32, i32
  }
  func.func @transform_3(%arg0: i32) -> (i32, i32, i32) {
    %c0_i32 = arith.constant 0 : i32
    %c0_i32_0 = arith.constant 0 : i32
    %c0_i32_1 = arith.constant 0 : i32
    %c0_i32_2 = arith.constant 0 : i32
    return %c0_i32, %c0_i32_0, %c0_i32_1 : i32, i32, i32
  }
  func.func @transform_4(%arg0: i32) -> (i32, i32) {
    %c0_i32 = arith.constant 0 : i32
    %c0_i32_0 = arith.constant 0 : i32
    %c0_i32_1 = arith.constant 0 : i32
    return %c0_i32, %c0_i32_0 : i32, i32
  }
  func.func @transform_5(%arg0: i32) -> (i32, i32) {
    %c0_i32 = arith.constant 0 : i32
    %c0_i32_0 = arith.constant 0 : i32
    %c0_i32_1 = arith.constant 0 : i32
    return %c0_i32, %c0_i32_0 : i32, i32
  }
  func.func @transform_6(%arg0: i32) -> (i32, i32) {
    %c0_i32 = arith.constant 0 : i32
    %c0_i32_0 = arith.constant 0 : i32
    return %c0_i32, %arg0 : i32, i32
  }
}

</mosaic_0001>

<llo_original>
// kernel: tpu_custom_call.1
$region0: #{tpu_custom_call.1}
  #allocation0 [shape = 'u32[]', space=smem, size = 0x4, offset = 0x4, fixed_abs, tag = 'smem constant byte address 0x4 - core index']
  #allocation1 [shape = 'u32[144,128]{1,0:T(1,128)}', space=vmem, size = 0x12000, scoped, tag = 'internal scratch']
  %s0 = inlined_call_operand.vmem [shape: bf16[7,4,128], index: 0, kind: input, shape index: {}]
  %s1 = inlined_call_operand.vmem [shape: bf16[3,16,4], index: 1, kind: input, shape index: {}]
  %s2 = inlined_call_operand.vmem [shape: f32[16,1], index: 2, kind: input, shape index: {}]
  %s3 = inlined_call_operand.vmem [shape: bf16[5,32,16], index: 3, kind: input, shape index: {}]
  %s4 = inlined_call_operand.vmem [shape: f32[32,1], index: 4, kind: input, shape index: {}]
  %s5 = inlined_call_operand.vmem [shape: f32[32,128], index: 5, kind: input, shape index: {}]
  %s6 = inlined_call_operand.hbm [shape: f32[1,128], index: 6, kind: output, shape index: {}]
  %s7 = sld [smem:[#allocation0]]
  $region34: #{tpu_custom_call.1} parent=0
    _
  %s9 = ssub.s32 1, %s7
  %s10 = scalar_select 0, %s9, %s7
  $region1: #{tpu_custom_call.1} parent=0
    #allocation2 [shape = 'u8[512]{0}', space=vmem, size = 0x400, scoped, tag = 'output window, operand 0, single buffered']
    #allocation3 [shape = 's32[1]{0}', space=sflag, size = 0x4, scoped, tag = 'scoped memory for tpu_custom_call.1']
    %11 = vsyncpa [#allocation3], 0
    // Predicated region
    $region2: #{tpu_custom_call.1} parent=1 // pred_check
      _
    $region3: #{tpu_custom_call.1} parent=1 // pred_check_branch
      %13 = sbr.rel (0) target = $region5
    $region4: #{tpu_custom_call.1} parent=1 // pred_region
      _
    $region5: #{tpu_custom_call.1} parent=1 // pred_fallthru
      _
    // Predicated region
    $region6: #{tpu_custom_call.1} parent=1 // pred_check
      _
    $region7: #{tpu_custom_call.1} parent=1 // pred_check_branch
      %15 = sbr.rel (0) target = $region9
    $region8: #{tpu_custom_call.1} parent=1 // pred_region
      _
    $region9: #{tpu_custom_call.1} parent=1 // pred_fallthru
      _
    // Predicated region
    $region10: #{tpu_custom_call.1} parent=1 // pred_check
      _
    $region11: #{tpu_custom_call.1} parent=1 // pred_check_branch
      %17 = sbr.rel (0) target = $region13
    $region12: #{tpu_custom_call.1} parent=1 // pred_region
      _
    $region13: #{tpu_custom_call.1} parent=1 // pred_fallthru
      _
    // Predicated region
    $region14: #{tpu_custom_call.1} parent=1 // pred_check
      _
    $region15: #{tpu_custom_call.1} parent=1 // pred_check_branch
      %19 = sbr.rel (0) target = $region17
    $region16: #{tpu_custom_call.1} parent=1 // pred_region
      _
    $region17: #{tpu_custom_call.1} parent=1 // pred_fallthru
      _
    // Predicated region
    $region18: #{tpu_custom_call.1} parent=1 // pred_check
      _
    $region19: #{tpu_custom_call.1} parent=1 // pred_check_branch
      %21 = sbr.rel (0) target = $region21
    $region20: #{tpu_custom_call.1} parent=1 // pred_region
      _
    $region21: #{tpu_custom_call.1} parent=1 // pred_fallthru
      _
    // Predicated region
    $region22: #{tpu_custom_call.1} parent=1 // pred_check
      _
    $region23: #{tpu_custom_call.1} parent=1 // pred_check_branch
      %23 = sbr.rel (0) target = $region25
    $region24: #{tpu_custom_call.1} parent=1 // pred_region
      _
    $region25: #{tpu_custom_call.1} parent=1 // pred_fallthru
      _
    %v25 = vld [vmem:[%s2] sm:$0xff]
    %v26 = vld [vmem:[%s2 + $0x8] sm:$0xff]
    %28 = vset.pattern.permute.xlu0 0
    %29 = vperm.xlu0 %28, %v25
    %v30 = vpop.permute.xlu0 %29
    %33 = vset.pattern.permute.xlu0 0
    %34 = vperm.xlu0 %33, %v26
    %v35 = vpop.permute.xlu0 %34
    %v37 = vld [vmem:[%s4] sm:$0xff]
    %v38 = vld [vmem:[%s4 + $0x8] sm:$0xff]
    %v39 = vld [vmem:[%s4 + $0x10] sm:$0xff]
    %v40 = vld [vmem:[%s4 + $0x18] sm:$0xff]
    %42 = vset.pattern.permute.xlu0 0
    %43 = vperm.xlu0 %42, %v37
    %v44 = vpop.permute.xlu0 %43
    %47 = vset.pattern.permute.xlu0 0
    %48 = vperm.xlu0 %47, %v38
    %v49 = vpop.permute.xlu0 %48
    %52 = vset.pattern.permute.xlu0 0
    %53 = vperm.xlu0 %52, %v39
    %v54 = vpop.permute.xlu0 %53
    %57 = vset.pattern.permute.xlu0 0
    %58 = vperm.xlu0 %57, %v40
    %v59 = vpop.permute.xlu0 %58
    %v61 = vld [vmem:[%s1] sm:$0xf]
    %v62 = vld [vmem:[%s1 + $0x4] sm:$0xf]
    %v63 = vld [vmem:[%s0] sm:$0x3]
    %v66 = vunpack.c.l.b16 %v61
    %v67 = vunpack.c.l.b16 %v62
    %v68 = vpack.c.b16 %v67, %v66
    %vm69 = vcmask 31744
    %v71 = vsel %vm69, %v68, 0
    %vm73 = vcmask 1041408
    %v75 = vsel %vm73, %v63, 0
    %77 = vmatprep.subr.bf16.mxu0 0
    %78 = vmatpush1.bf16.msra.mxu0 %v75
    %79 = vmatprep.subr.bf16.mxu0 0
    %80 = vmatpush1.bf16.msra.mxu0 0
    %81 = vmatprep.subr.bf16.mxu0 0
    %82 = vmatpush1.bf16.msra.mxu0 0
    %83 = vmatprep.subr.bf16.mxu0 0
    %84 = vmatpush1.bf16.msra.mxu0 0
    %85 = vmatprep.subr.bf16.mxu0 0
    %86 = vmatpush1.bf16.msra.mxu0 0
    %87 = vmatprep.subr.bf16.mxu0 0
    %88 = vmatpush1.bf16.msra.mxu0 0
    %89 = vmatprep.subr.bf16.mxu0 0
    %90 = vmatpush1.bf16.msra.mxu0 0
    %91 = vmatprep.subr.bf16.mxu0 0
    %92 = vmatpush1.bf16.msra.mxu0 0
    %93 = vmatprep.subr.bf16.mxu0 0
    %94 = vmatpush1.bf16.msra.mxu0 0
    %95 = vmatprep.subr.bf16.mxu0 0
    %96 = vmatpush1.bf16.msra.mxu0 0
    %97 = vmatprep.subr.bf16.mxu0 0
    %98 = vmatpush1.bf16.msra.mxu0 0
    %99 = vmatprep.subr.bf16.mxu0 0
    %100 = vmatpush1.bf16.msra.mxu0 0
    %101 = vmatprep.subr.bf16.mxu0 0
    %102 = vmatpush1.bf16.msra.mxu0 0
    %103 = vmatprep.subr.bf16.mxu0 0
    %104 = vmatpush1.bf16.msra.mxu0 0
    %105 = vmatprep.subr.bf16.mxu0 0
    %106 = vmatpush1.bf16.msra.mxu0 0
    %107 = vmatprep.subr.bf16.mxu0 0
    %108 = vmatpush1.bf16.msra.mxu0 0
    %109 = vmatprep.mubr.bf16.mxu0 0
    %110 = vmatmul.mubr.bf16.gmra.mrb[0].mxu0 %v71
    %v111 = vpop.f32.mrb[0].mxu0
    %v112 = vadd.f32 0.0, %v111
    %v113 = vpop.f32.mrb[0].mxu0
    %v114 = vpop.f32.mrb[0].mxu0
    %v115 = vadd.f32 0.0, %v114
    %v116 = vpop.f32.mrb[0].mxu0
    %117 = vdwg.mxu0
    %v118 = vadd.f32 %v30, %v112
    %v119 = vadd.f32 %v35, %v115
    %s120 = scalar_lea.vmem %s1, 8
    %v121 = vld [vmem:[%s120] sm:$0xf]
    %v122 = vld [vmem:[%s120 + $0x4] sm:$0xf]
    %s123 = scalar_lea.vmem %s0, 2
    %v124 = vld [vmem:[%s123] sm:$0x3]
    %v127 = vunpack.c.l.b16 %v121
    %v128 = vunpack.c.l.b16 %v122
    %v129 = vpack.c.b16 %v128, %v127
    %v131 = vsel %vm69, %v129, 0
    %v134 = vsel %vm73, %v124, 0
    %136 = vmatprep.subr.bf16.mxu0 0
    %137 = vmatpush1.bf16.msra.mxu0 %v134
    %138 = vmatprep.subr.bf16.mxu0 0
    %139 = vmatpush1.bf16.msra.mxu0 0
    %140 = vmatprep.subr.bf16.mxu0 0
    %141 = vmatpush1.bf16.msra.mxu0 0
    %142 = vmatprep.subr.bf16.mxu0 0
    %143 = vmatpush1.bf16.msra.mxu0 0
    %144 = vmatprep.subr.bf16.mxu0 0
    %145 = vmatpush1.bf16.msra.mxu0 0
    %146 = vmatprep.subr.bf16.mxu0 0
    %147 = vmatpush1.bf16.msra.mxu0 0
    %148 = vmatprep.subr.bf16.mxu0 0
    %149 = vmatpush1.bf16.msra.mxu0 0
    %150 = vmatprep.subr.bf16.mxu0 0
    %151 = vmatpush1.bf16.msra.mxu0 0
    %152 = vmatprep.subr.bf16.mxu0 0
    %153 = vmatpush1.bf16.msra.mxu0 0
    %154 = vmatprep.subr.bf16.mxu0 0
    %155 = vmatpush1.bf16.msra.mxu0 0
    %156 = vmatprep.subr.bf16.mxu0 0
    %157 = vmatpush1.bf16.msra.mxu0 0
    %158 = vmatprep.subr.bf16.mxu0 0
    %159 = vmatpush1.bf16.msra.mxu0 0
    %160 = vmatprep.subr.bf16.mxu0 0
    %161 = vmatpush1.bf16.msra.mxu0 0
    %162 = vmatprep.subr.bf16.mxu0 0
    %163 = vmatpush1.bf16.msra.mxu0 0
    %164 = vmatprep.subr.bf16.mxu0 0
    %165 = vmatpush1.bf16.msra.mxu0 0
    %166 = vmatprep.subr.bf16.mxu0 0
    %167 = vmatpush1.bf16.msra.mxu0 0
    %168 = vmatprep.mubr.bf16.mxu0 0
    %169 = vmatmul.mubr.bf16.gmra.mrb[0].mxu0 %v131
    %v170 = vpop.f32.mrb[0].mxu0
    %v171 = vadd.f32 0.0, %v170
    %v172 = vpop.f32.mrb[0].mxu0
    %v173 = vpop.f32.mrb[0].mxu0
    %v174 = vadd.f32 0.0, %v173
    %v175 = vpop.f32.mrb[0].mxu0
    %176 = vdwg.mxu0
    %v177 = vadd.f32 %v118, %v171
    %v178 = vadd.f32 %v119, %v174
    %s179 = scalar_lea.vmem %s1, 16
    %v180 = vld [vmem:[%s179] sm:$0xf]
    %v181 = vld [vmem:[%s179 + $0x4] sm:$0xf]
    %s182 = scalar_lea.vmem %s0, 4
    %v183 = vld [vmem:[%s182] sm:$0x3]
    %v186 = vunpack.c.l.b16 %v180
    %v187 = vunpack.c.l.b16 %v181
    %v188 = vpack.c.b16 %v187, %v186
    %v190 = vsel %vm69, %v188, 0
    %v193 = vsel %vm73, %v183, 0
    %195 = vmatprep.subr.bf16.mxu0 0
    %196 = vmatpush1.bf16.msra.mxu0 %v193
    %197 = vmatprep.subr.bf16.mxu0 0
    %198 = vmatpush1.bf16.msra.mxu0 0
    %199 = vmatprep.subr.bf16.mxu0 0
    %200 = vmatpush1.bf16.msra.mxu0 0
    %201 = vmatprep.subr.bf16.mxu0 0
    %202 = vmatpush1.bf16.msra.mxu0 0
    %203 = vmatprep.subr.bf16.mxu0 0
    %204 = vmatpush1.bf16.msra.mxu0 0
    %205 = vmatprep.subr.bf16.mxu0 0
    %206 = vmatpush1.bf16.msra.mxu0 0
    %207 = vmatprep.subr.bf16.mxu0 0
    %208 = vmatpush1.bf16.msra.mxu0 0
    %209 = vmatprep.subr.bf16.mxu0 0
    %210 = vmatpush1.bf16.msra.mxu0 0
    %211 = vmatprep.subr.bf16.mxu0 0
    %212 = vmatpush1.bf16.msra.mxu0 0
    %213 = vmatprep.subr.bf16.mxu0 0
    %214 = vmatpush1.bf16.msra.mxu0 0
    %215 = vmatprep.subr.bf16.mxu0 0
    %216 = vmatpush1.bf16.msra.mxu0 0
    %217 = vmatprep.subr.bf16.mxu0 0
    %218 = vmatpush1.bf16.msra.mxu0 0
    %219 = vmatprep.subr.bf16.mxu0 0
    %220 = vmatpush1.bf16.msra.mxu0 0
    %221 = vmatprep.subr.bf16.mxu0 0
    %222 = vmatpush1.bf16.msra.mxu0 0
    %223 = vmatprep.subr.bf16.mxu0 0
    %224 = vmatpush1.bf16.msra.mxu0 0
    %225 = vmatprep.subr.bf16.mxu0 0
    %226 = vmatpush1.bf16.msra.mxu0 0
    %227 = vmatprep.mubr.bf16.mxu0 0
    %228 = vmatmul.mubr.bf16.gmra.mrb[0].mxu0 %v190
    %v229 = vpop.f32.mrb[0].mxu0
    %v230 = vadd.f32 0.0, %v229
    %v231 = vpop.f32.mrb[0].mxu0
    %v232 = vpop.f32.mrb[0].mxu0
    %v233 = vadd.f32 0.0, %v232
    %v234 = vpop.f32.mrb[0].mxu0
    %235 = vdwg.mxu0
    %v236 = vadd.f32 %v177, %v230
    %v237 = vadd.f32 %v178, %v233
    %v238 = vmax.f32 %v236, 0.0
    %v239 = vmax.f32 %v237, 0.0
    %v240 = vpack.c.bf16 %v239, %v238
    %v241 = vld [vmem:[%s3] sm:$0xf]
    %v242 = vld [vmem:[%s3 + $0x4] sm:$0xf]
    %v243 = vld [vmem:[%s3 + $0x8] sm:$0xf]
    %v244 = vld [vmem:[%s3 + $0xc] sm:$0xf]
    %v249 = vunpack.c.l.b16 %v241
    %v250 = vunpack.c.l.b16 %v242
    %v251 = vunpack.c.l.b16 %v243
    %v252 = vunpack.c.l.b16 %v244
    %v253 = vpack.c.b16 %v250, %v249
    %v254 = vpack.c.b16 %v252, %v251
    %vm255 = vcmask 130048
    %v257 = vsel %vm255, %v253, 0
    %v260 = vsel %vm255, %v254, 0
    %262 = vmatprep.subr.bf16.mxu0 0
    %263 = vmatpush1.bf16.msra.mxu0 %v240
    %264 = vmatprep.subr.bf16.mxu0 0
    %265 = vmatpush1.bf16.msra.mxu0 0
    %266 = vmatprep.subr.bf16.mxu0 0
    %267 = vmatpush1.bf16.msra.mxu0 0
    %268 = vmatprep.subr.bf16.mxu0 0
    %269 = vmatpush1.bf16.msra.mxu0 0
    %270 = vmatprep.subr.bf16.mxu0 0
    %271 = vmatpush1.bf16.msra.mxu0 0
    %272 = vmatprep.subr.bf16.mxu0 0
    %273 = vmatpush1.bf16.msra.mxu0 0
    %274 = vmatprep.subr.bf16.mxu0 0
    %275 = vmatpush1.bf16.msra.mxu0 0
    %276 = vmatprep.subr.bf16.mxu0 0
    %277 = vmatpush1.bf16.msra.mxu0 0
    %278 = vmatprep.subr.bf16.mxu0 0
    %279 = vmatpush1.bf16.msra.mxu0 0
    %280 = vmatprep.subr.bf16.mxu0 0
    %281 = vmatpush1.bf16.msra.mxu0 0
    %282 = vmatprep.subr.bf16.mxu0 0
    %283 = vmatpush1.bf16.msra.mxu0 0
    %284 = vmatprep.subr.bf16.mxu0 0
    %285 = vmatpush1.bf16.msra.mxu0 0
    %286 = vmatprep.subr.bf16.mxu0 0
    %287 = vmatpush1.bf16.msra.mxu0 0
    %288 = vmatprep.subr.bf16.mxu0 0
    %289 = vmatpush1.bf16.msra.mxu0 0
    %290 = vmatprep.subr.bf16.mxu0 0
    %291 = vmatpush1.bf16.msra.mxu0 0
    %292 = vmatprep.subr.bf16.mxu0 0
    %293 = vmatpush1.bf16.msra.mxu0 0
    %294 = vmatprep.mubr.bf16.mxu0 0
    %295 = vmatmul.mubr.bf16.gmra.mrb[0].mxu0 %v257
    %v296 = vpop.f32.mrb[0].mxu0
    %v297 = vadd.f32 0.0, %v296
    %v298 = vpop.f32.mrb[0].mxu0
    %v299 = vpop.f32.mrb[0].mxu0
    %v300 = vadd.f32 0.0, %v299
    %v301 = vpop.f32.mrb[0].mxu0
    %302 = vmatprep.mubr.bf16.mxu0 0
    %303 = vmatmul.mubr.bf16.gmra.mrb[0].mxu0 %v260
    %v304 = vpop.f32.mrb[0].mxu0
    %v305 = vadd.f32 0.0, %v304
    %v306 = vpop.f32.mrb[0].mxu0
    %v307 = vpop.f32.mrb[0].mxu0
    %v308 = vadd.f32 0.0, %v307
    %v309 = vpop.f32.mrb[0].mxu0
    %310 = vdwg.mxu0
    %v311 = vadd.f32 %v44, %v297
    %v312 = vadd.f32 %v49, %v300
    %v313 = vadd.f32 %v54, %v305
    %v314 = vadd.f32 %v59, %v308
    %315 = vmatprep.subr.bf16.mxu0 0
    %316 = vmatpush1.bf16.msra.mxu0 %v134
    %317 = vmatprep.subr.bf16.mxu0 0
    %318 = vmatpush1.bf16.msra.mxu0 0
    %319 = vmatprep.subr.bf16.mxu0 0
    %320 = vmatpush1.bf16.msra.mxu0 0
    %321 = vmatprep.subr.bf16.mxu0 0
    %322 = vmatpush1.bf16.msra.mxu0 0
    %323 = vmatprep.subr.bf16.mxu0 0
    %324 = vmatpush1.bf16.msra.mxu0 0
    %325 = vmatprep.subr.bf16.mxu0 0
    %326 = vmatpush1.bf16.msra.mxu0 0
    %327 = vmatprep.subr.bf16.mxu0 0
    %328 = vmatpush1.bf16.msra.mxu0 0
    %329 = vmatprep.subr.bf16.mxu0 0
    %330 = vmatpush1.bf16.msra.mxu0 0
    %331 = vmatprep.subr.bf16.mxu0 0
    %332 = vmatpush1.bf16.msra.mxu0 0
    %333 = vmatprep.subr.bf16.mxu0 0
    %334 = vmatpush1.bf16.msra.mxu0 0
    %335 = vmatprep.subr.bf16.mxu0 0
    %336 = vmatpush1.bf16.msra.mxu0 0
    %337 = vmatprep.subr.bf16.mxu0 0
    %338 = vmatpush1.bf16.msra.mxu0 0
    %339 = vmatprep.subr.bf16.mxu0 0
    %340 = vmatpush1.bf16.msra.mxu0 0
    %341 = vmatprep.subr.bf16.mxu0 0
    %342 = vmatpush1.bf16.msra.mxu0 0
    %343 = vmatprep.subr.bf16.mxu0 0
    %344 = vmatpush1.bf16.msra.mxu0 0
    %345 = vmatprep.subr.bf16.mxu0 0
    %346 = vmatpush1.bf16.msra.mxu0 0
    %347 = vmatprep.mubr.bf16.mxu0 0
    %348 = vmatmul.mubr.bf16.gmra.mrb[0].mxu0 %v71
    %v349 = vpop.f32.mrb[0].mxu0
    %v350 = vadd.f32 0.0, %v349
    %v351 = vpop.f32.mrb[0].mxu0
    %v352 = vpop.f32.mrb[0].mxu0
    %v353 = vadd.f32 0.0, %v352
    %v354 = vpop.f32.mrb[0].mxu0
    %355 = vdwg.mxu0
    %v356 = vadd.f32 %v30, %v350
    %v357 = vadd.f32 %v35, %v353
    %358 = vmatprep.subr.bf16.mxu0 0
    %359 = vmatpush1.bf16.msra.mxu0 %v193
    %360 = vmatprep.subr.bf16.mxu0 0
    %361 = vmatpush1.bf16.msra.mxu0 0
    %362 = vmatprep.subr.bf16.mxu0 0
    %363 = vmatpush1.bf16.msra.mxu0 0
    %364 = vmatprep.subr.bf16.mxu0 0
    %365 = vmatpush1.bf16.msra.mxu0 0
    %366 = vmatprep.subr.bf16.mxu0 0
    %367 = vmatpush1.bf16.msra.mxu0 0
    %368 = vmatprep.subr.bf16.mxu0 0
    %369 = vmatpush1.bf16.msra.mxu0 0
    %370 = vmatprep.subr.bf16.mxu0 0
    %371 = vmatpush1.bf16.msra.mxu0 0
    %372 = vmatprep.subr.bf16.mxu0 0
    %373 = vmatpush1.bf16.msra.mxu0 0
    %374 = vmatprep.subr.bf16.mxu0 0
    %375 = vmatpush1.bf16.msra.mxu0 0
    %376 = vmatprep.subr.bf16.mxu0 0
    %377 = vmatpush1.bf16.msra.mxu0 0
    %378 = vmatprep.subr.bf16.mxu0 0
    %379 = vmatpush1.bf16.msra.mxu0 0
    %380 = vmatprep.subr.bf16.mxu0 0
    %381 = vmatpush1.bf16.msra.mxu0 0
    %382 = vmatprep.subr.bf16.mxu0 0
    %383 = vmatpush1.bf16.msra.mxu0 0
    %384 = vmatprep.subr.bf16.mxu0 0
    %385 = vmatpush1.bf16.msra.mxu0 0
    %386 = vmatprep.subr.bf16.mxu0 0
    %387 = vmatpush1.bf16.msra.mxu0 0
    %388 = vmatprep.subr.bf16.mxu0 0
    %389 = vmatpush1.bf16.msra.mxu0 0
    %390 = vmatprep.mubr.bf16.mxu0 0
    %391 = vmatmul.mubr.bf16.gmra.mrb[0].mxu0 %v131
    %v392 = vpop.f32.mrb[0].mxu0
    %v393 = vadd.f32 0.0, %v392
    %v394 = vpop.f32.mrb[0].mxu0
    %v395 = vpop.f32.mrb[0].mxu0
    %v396 = vadd.f32 0.0, %v395
    %v397 = vpop.f32.mrb[0].mxu0
    %398 = vdwg.mxu0
    %v399 = vadd.f32 %v356, %v393
    %v400 = vadd.f32 %v357, %v396
    %s401 = scalar_lea.vmem %s0, 6
    %v402 = vld [vmem:[%s401] sm:$0x3]
    %v404 = vsel %vm73, %v402, 0
    %406 = vmatprep.subr.bf16.mxu0 0
    %407 = vmatpush1.bf16.msra.mxu0 %v404
    %408 = vmatprep.subr.bf16.mxu0 0
    %409 = vmatpush1.bf16.msra.mxu0 0
    %410 = vmatprep.subr.bf16.mxu0 0
    %411 = vmatpush1.bf16.msra.mxu0 0
    %412 = vmatprep.subr.bf16.mxu0 0
    %413 = vmatpush1.bf16.msra.mxu0 0
    %414 = vmatprep.subr.bf16.mxu0 0
    %415 = vmatpush1.bf16.msra.mxu0 0
    %416 = vmatprep.subr.bf16.mxu0 0
    %417 = vmatpush1.bf16.msra.mxu0 0
    %418 = vmatprep.subr.bf16.mxu0 0
    %419 = vmatpush1.bf16.msra.mxu0 0
    %420 = vmatprep.subr.bf16.mxu0 0
    %421 = vmatpush1.bf16.msra.mxu0 0
    %422 = vmatprep.subr.bf16.mxu0 0
    %423 = vmatpush1.bf16.msra.mxu0 0
    %424 = vmatprep.subr.bf16.mxu0 0
    %425 = vmatpush1.bf16.msra.mxu0 0
    %426 = vmatprep.subr.bf16.mxu0 0
    %427 = vmatpush1.bf16.msra.mxu0 0
    %428 = vmatprep.subr.bf16.mxu0 0
    %429 = vmatpush1.bf16.msra.mxu0 0
    %430 = vmatprep.subr.bf16.mxu0 0
    %431 = vmatpush1.bf16.msra.mxu0 0
    %432 = vmatprep.subr.bf16.mxu0 0
    %433 = vmatpush1.bf16.msra.mxu0 0
    %434 = vmatprep.subr.bf16.mxu0 0
    %435 = vmatpush1.bf16.msra.mxu0 0
    %436 = vmatprep.subr.bf16.mxu0 0
    %437 = vmatpush1.bf16.msra.mxu0 0
    %438 = vmatprep.mubr.bf16.mxu0 0
    %439 = vmatmul.mubr.bf16.gmra.mrb[0].mxu0 %v190
    %v440 = vpop.f32.mrb[0].mxu0
    %v441 = vadd.f32 0.0, %v440
    %v442 = vpop.f32.mrb[0].mxu0
    %v443 = vpop.f32.mrb[0].mxu0
    %v444 = vadd.f32 0.0, %v443
    %v445 = vpop.f32.mrb[0].mxu0
    %446 = vdwg.mxu0
    %v447 = vadd.f32 %v399, %v441
    %v448 = vadd.f32 %v400, %v444
    %v449 = vmax.f32 %v447, 0.0
    %v450 = vmax.f32 %v448, 0.0
    %v451 = vpack.c.bf16 %v450, %v449
    %s452 = scalar_lea.vmem %s3, 16
    %v453 = vld [vmem:[%s452] sm:$0xf]
    %v454 = vld [vmem:[%s452 + $0x4] sm:$0xf]
    %v455 = vld [vmem:[%s452 + $0x8] sm:$0xf]
    %v456 = vld [vmem:[%s452 + $0xc] sm:$0xf]
    %v461 = vunpack.c.l.b16 %v453
    %v462 = vunpack.c.l.b16 %v454
    %v463 = vunpack.c.l.b16 %v455
    %v464 = vunpack.c.l.b16 %v456
    %v465 = vpack.c.b16 %v462, %v461
    %v466 = vpack.c.b16 %v464, %v463
    %v468 = vsel %vm255, %v465, 0
    %v471 = vsel %vm255, %v466, 0
    %473 = vmatprep.subr.bf16.mxu0 0
    %474 = vmatpush1.bf16.msra.mxu0 %v451
    %475 = vmatprep.subr.bf16.mxu0 0
    %476 = vmatpush1.bf16.msra.mxu0 0
    %477 = vmatprep.subr.bf16.mxu0 0
    %478 = vmatpush1.bf16.msra.mxu0 0
    %479 = vmatprep.subr.bf16.mxu0 0
    %480 = vmatpush1.bf16.msra.mxu0 0
    %481 = vmatprep.subr.bf16.mxu0 0
    %482 = vmatpush1.bf16.msra.mxu0 0
    %483 = vmatprep.subr.bf16.mxu0 0
    %484 = vmatpush1.bf16.msra.mxu0 0
    %485 = vmatprep.subr.bf16.mxu0 0
    %486 = vmatpush1.bf16.msra.mxu0 0
    %487 = vmatprep.subr.bf16.mxu0 0
    %488 = vmatpush1.bf16.msra.mxu0 0
    %489 = vmatprep.subr.bf16.mxu0 0
    %490 = vmatpush1.bf16.msra.mxu0 0
    %491 = vmatprep.subr.bf16.mxu0 0
    %492 = vmatpush1.bf16.msra.mxu0 0
    %493 = vmatprep.subr.bf16.mxu0 0
    %494 = vmatpush1.bf16.msra.mxu0 0
    %495 = vmatprep.subr.bf16.mxu0 0
    %496 = vmatpush1.bf16.msra.mxu0 0
    %497 = vmatprep.subr.bf16.mxu0 0
    %498 = vmatpush1.bf16.msra.mxu0 0
    %499 = vmatprep.subr.bf16.mxu0 0
    %500 = vmatpush1.bf16.msra.mxu0 0
    %501 = vmatprep.subr.bf16.mxu0 0
    %502 = vmatpush1.bf16.msra.mxu0 0
    %503 = vmatprep.subr.bf16.mxu0 0
    %504 = vmatpush1.bf16.msra.mxu0 0
    %505 = vmatprep.mubr.bf16.mxu0 0
    %506 = vmatmul.mubr.bf16.gmra.mrb[0].mxu0 %v468
    %v507 = vpop.f32.mrb[0].mxu0
    %v508 = vadd.f32 0.0, %v507
    %v509 = vpop.f32.mrb[0].mxu0
    %v510 = vpop.f32.mrb[0].mxu0
    %v511 = vadd.f32 0.0, %v510
    %v512 = vpop.f32.mrb[0].mxu0
    %513 = vmatprep.mubr.bf16.mxu0 0
    %514 = vmatmul.mubr.bf16.gmra.mrb[0].mxu0 %v471
    %v515 = vpop.f32.mrb[0].mxu0
    %v516 = vadd.f32 0.0, %v515
    %v517 = vpop.f32.mrb[0].mxu0
    %v518 = vpop.f32.mrb[0].mxu0
    %v519 = vadd.f32 0.0, %v518
    %v520 = vpop.f32.mrb[0].mxu0
    %521 = vdwg.mxu0
    %v522 = vadd.f32 %v311, %v508
    %v523 = vadd.f32 %v312, %v511
    %v524 = vadd.f32 %v313, %v516
    %v525 = vadd.f32 %v314, %v519
    %526 = vmatprep.subr.bf16.mxu0 0
    %527 = vmatpush1.bf16.msra.mxu0 %v193
    %528 = vmatprep.subr.bf16.mxu0 0
    %529 = vmatpush1.bf16.msra.mxu0 0
    %530 = vmatprep.subr.bf16.mxu0 0
    %531 = vmatpush1.bf16.msra.mxu0 0
    %532 = vmatprep.subr.bf16.mxu0 0
    %533 = vmatpush1.bf16.msra.mxu0 0
    %534 = vmatprep.subr.bf16.mxu0 0
    %535 = vmatpush1.bf16.msra.mxu0 0
    %536 = vmatprep.subr.bf16.mxu0 0
    %537 = vmatpush1.bf16.msra.mxu0 0
    %538 = vmatprep.subr.bf16.mxu0 0
    %539 = vmatpush1.bf16.msra.mxu0 0
    %540 = vmatprep.subr.bf16.mxu0 0
    %541 = vmatpush1.bf16.msra.mxu0 0
    %542 = vmatprep.subr.bf16.mxu0 0
    %543 = vmatpush1.bf16.msra.mxu0 0
    %544 = vmatprep.subr.bf16.mxu0 0
    %545 = vmatpush1.bf16.msra.mxu0 0
    %546 = vmatprep.subr.bf16.mxu0 0
    %547 = vmatpush1.bf16.msra.mxu0 0
    %548 = vmatprep.subr.bf16.mxu0 0
    %549 = vmatpush1.bf16.msra.mxu0 0
    %550 = vmatprep.subr.bf16.mxu0 0
    %551 = vmatpush1.bf16.msra.mxu0 0
    %552 = vmatprep.subr.bf16.mxu0 0
    %553 = vmatpush1.bf16.msra.mxu0 0
    %554 = vmatprep.subr.bf16.mxu0 0
    %555 = vmatpush1.bf16.msra.mxu0 0
    %556 = vmatprep.subr.bf16.mxu0 0
    %557 = vmatpush1.bf16.msra.mxu0 0
    %558 = vmatprep.mubr.bf16.mxu0 0
    %559 = vmatmul.mubr.bf16.gmra.mrb[0].mxu0 %v71
    %v560 = vpop.f32.mrb[0].mxu0
    %v561 = vadd.f32 0.0, %v560
    %v562 = vpop.f32.mrb[0].mxu0
    %v563 = vpop.f32.mrb[0].mxu0
    %v564 = vadd.f32 0.0, %v563
    %v565 = vpop.f32.mrb[0].mxu0
    %566 = vdwg.mxu0
    %v567 = vadd.f32 %v30, %v561
    %v568 = vadd.f32 %v35, %v564
    %569 = vmatprep.subr.bf16.mxu0 0
    %570 = vmatpush1.bf16.msra.mxu0 %v404
    %571 = vmatprep.subr.bf16.mxu0 0
    %572 = vmatpush1.bf16.msra.mxu0 0
    %573 = vmatprep.subr.bf16.mxu0 0
    %574 = vmatpush1.bf16.msra.mxu0 0
    %575 = vmatprep.subr.bf16.mxu0 0
    %576 = vmatpush1.bf16.msra.mxu0 0
    %577 = vmatprep.subr.bf16.mxu0 0
    %578 = vmatpush1.bf16.msra.mxu0 0
    %579 = vmatprep.subr.bf16.mxu0 0
    %580 = vmatpush1.bf16.msra.mxu0 0
    %581 = vmatprep.subr.bf16.mxu0 0
    %582 = vmatpush1.bf16.msra.mxu0 0
    %583 = vmatprep.subr.bf16.mxu0 0
    %584 = vmatpush1.bf16.msra.mxu0 0
    %585 = vmatprep.subr.bf16.mxu0 0
    %586 = vmatpush1.bf16.msra.mxu0 0
    %587 = vmatprep.subr.bf16.mxu0 0
    %588 = vmatpush1.bf16.msra.mxu0 0
    %589 = vmatprep.subr.bf16.mxu0 0
    %590 = vmatpush1.bf16.msra.mxu0 0
    %591 = vmatprep.subr.bf16.mxu0 0
    %592 = vmatpush1.bf16.msra.mxu0 0
    %593 = vmatprep.subr.bf16.mxu0 0
    %594 = vmatpush1.bf16.msra.mxu0 0
    %595 = vmatprep.subr.bf16.mxu0 0
    %596 = vmatpush1.bf16.msra.mxu0 0
    %597 = vmatprep.subr.bf16.mxu0 0
    %598 = vmatpush1.bf16.msra.mxu0 0
    %599 = vmatprep.subr.bf16.mxu0 0
    %600 = vmatpush1.bf16.msra.mxu0 0
    %601 = vmatprep.mubr.bf16.mxu0 0
    %602 = vmatmul.mubr.bf16.gmra.mrb[0].mxu0 %v131
    %v603 = vpop.f32.mrb[0].mxu0
    %v604 = vadd.f32 0.0, %v603
    %v605 = vpop.f32.mrb[0].mxu0
    %v606 = vpop.f32.mrb[0].mxu0
    %v607 = vadd.f32 0.0, %v606
    %v608 = vpop.f32.mrb[0].mxu0
    %609 = vdwg.mxu0
    %v610 = vadd.f32 %v567, %v604
    %v611 = vadd.f32 %v568, %v607
    %s612 = scalar_lea.vmem %s0, 8
    %v613 = vld [vmem:[%s612] sm:$0x3]
    %v615 = vsel %vm73, %v613, 0
    %617 = vmatprep.subr.bf16.mxu0 0
    %618 = vmatpush1.bf16.msra.mxu0 %v615
    %619 = vmatprep.subr.bf16.mxu0 0
    %620 = vmatpush1.bf16.msra.mxu0 0
    %621 = vmatprep.subr.bf16.mxu0 0
    %622 = vmatpush1.bf16.msra.mxu0 0
    %623 = vmatprep.subr.bf16.mxu0 0
    %624 = vmatpush1.bf16.msra.mxu0 0
    %625 = vmatprep.subr.bf16.mxu0 0
    %626 = vmatpush1.bf16.msra.mxu0 0
    %627 = vmatprep.subr.bf16.mxu0 0
    %628 = vmatpush1.bf16.msra.mxu0 0
    %629 = vmatprep.subr.bf16.mxu0 0
    %630 = vmatpush1.bf16.msra.mxu0 0
    %631 = vmatprep.subr.bf16.mxu0 0
    %632 = vmatpush1.bf16.msra.mxu0 0
    %633 = vmatprep.subr.bf16.mxu0 0
    %634 = vmatpush1.bf16.msra.mxu0 0
    %635 = vmatprep.subr.bf16.mxu0 0
    %636 = vmatpush1.bf16.msra.mxu0 0
    %637 = vmatprep.subr.bf16.mxu0 0
    %638 = vmatpush1.bf16.msra.mxu0 0
    %639 = vmatprep.subr.bf16.mxu0 0
    %640 = vmatpush1.bf16.msra.mxu0 0
    %641 = vmatprep.subr.bf16.mxu0 0
    %642 = vmatpush1.bf16.msra.mxu0 0
    %643 = vmatprep.subr.bf16.mxu0 0
    %644 = vmatpush1.bf16.msra.mxu0 0
    %645 = vmatprep.subr.bf16.mxu0 0
    %646 = vmatpush1.bf16.msra.mxu0 0
    %647 = vmatprep.subr.bf16.mxu0 0
    %648 = vmatpush1.bf16.msra.mxu0 0
    %649 = vmatprep.mubr.bf16.mxu0 0
    %650 = vmatmul.mubr.bf16.gmra.mrb[0].mxu0 %v190
    %v651 = vpop.f32.mrb[0].mxu0
    %v652 = vadd.f32 0.0, %v651
    %v653 = vpop.f32.mrb[0].mxu0
    %v654 = vpop.f32.mrb[0].mxu0
    %v655 = vadd.f32 0.0, %v654
    %v656 = vpop.f32.mrb[0].mxu0
    %657 = vdwg.mxu0
    %v658 = vadd.f32 %v610, %v652
    %v659 = vadd.f32 %v611, %v655
    %v660 = vmax.f32 %v658, 0.0
    %v661 = vmax.f32 %v659, 0.0
    %v662 = vpack.c.bf16 %v661, %v660
    %s663 = scalar_lea.vmem %s3, 32
    %v664 = vld [vmem:[%s663] sm:$0xf]
    %v665 = vld [vmem:[%s663 + $0x4] sm:$0xf]
    %v666 = vld [vmem:[%s663 + $0x8] sm:$0xf]
    %v667 = vld [vmem:[%s663 + $0xc] sm:$0xf]
    %v672 = vunpack.c.l.b16 %v664
    %v673 = vunpack.c.l.b16 %v665
    %v674 = vunpack.c.l.b16 %v666
    %v675 = vunpack.c.l.b16 %v667
    %v676 = vpack.c.b16 %v673, %v672
    %v677 = vpack.c.b16 %v675, %v674
    %v679 = vsel %vm255, %v676, 0
    %v682 = vsel %vm255, %v677, 0
    %684 = vmatprep.subr.bf16.mxu0 0
    %685 = vmatpush1.bf16.msra.mxu0 %v662
    %686 = vmatprep.subr.bf16.mxu0 0
    %687 = vmatpush1.bf16.msra.mxu0 0
    %688 = vmatprep.subr.bf16.mxu0 0
    %689 = vmatpush1.bf16.msra.mxu0 0
    %690 = vmatprep.subr.bf16.mxu0 0
    %691 = vmatpush1.bf16.msra.mxu0 0
    %692 = vmatprep.subr.bf16.mxu0 0
    %693 = vmatpush1.bf16.msra.mxu0 0
    %694 = vmatprep.subr.bf16.mxu0 0
    %695 = vmatpush1.bf16.msra.mxu0 0
    %696 = vmatprep.subr.bf16.mxu0 0
    %697 = vmatpush1.bf16.msra.mxu0 0
    %698 = vmatprep.subr.bf16.mxu0 0
    %699 = vmatpush1.bf16.msra.mxu0 0
    %700 = vmatprep.subr.bf16.mxu0 0
    %701 = vmatpush1.bf16.msra.mxu0 0
    %702 = vmatprep.subr.bf16.mxu0 0
    %703 = vmatpush1.bf16.msra.mxu0 0
    %704 = vmatprep.subr.bf16.mxu0 0
    %705 = vmatpush1.bf16.msra.mxu0 0
    %706 = vmatprep.subr.bf16.mxu0 0
    %707 = vmatpush1.bf16.msra.mxu0 0
    %708 = vmatprep.subr.bf16.mxu0 0
    %709 = vmatpush1.bf16.msra.mxu0 0
    %710 = vmatprep.subr.bf16.mxu0 0
    %711 = vmatpush1.bf16.msra.mxu0 0
    %712 = vmatprep.subr.bf16.mxu0 0
    %713 = vmatpush1.bf16.msra.mxu0 0
    %714 = vmatprep.subr.bf16.mxu0 0
    %715 = vmatpush1.bf16.msra.mxu0 0
    %716 = vmatprep.mubr.bf16.mxu0 0
    %717 = vmatmul.mubr.bf16.gmra.mrb[0].mxu0 %v679
    %v718 = vpop.f32.mrb[0].mxu0
    %v719 = vadd.f32 0.0, %v718
    %v720 = vpop.f32.mrb[0].mxu0
    %v721 = vpop.f32.mrb[0].mxu0
    %v722 = vadd.f32 0.0, %v721
    %v723 = vpop.f32.mrb[0].mxu0
    %724 = vmatprep.mubr.bf16.mxu0 0
    %725 = vmatmul.mubr.bf16.gmra.mrb[0].mxu0 %v682
    %v726 = vpop.f32.mrb[0].mxu0
    %v727 = vadd.f32 0.0, %v726
    %v728 = vpop.f32.mrb[0].mxu0
    %v729 = vpop.f32.mrb[0].mxu0
    %v730 = vadd.f32 0.0, %v729
    %v731 = vpop.f32.mrb[0].mxu0
    %732 = vdwg.mxu0
    %v733 = vadd.f32 %v522, %v719
    %v734 = vadd.f32 %v523, %v722
    %v735 = vadd.f32 %v524, %v727
    %v736 = vadd.f32 %v525, %v730
    %737 = vmatprep.subr.bf16.mxu0 0
    %738 = vmatpush1.bf16.msra.mxu0 %v404
    %739 = vmatprep.subr.bf16.mxu0 0
    %740 = vmatpush1.bf16.msra.mxu0 0
    %741 = vmatprep.subr.bf16.mxu0 0
    %742 = vmatpush1.bf16.msra.mxu0 0
    %743 = vmatprep.subr.bf16.mxu0 0
    %744 = vmatpush1.bf16.msra.mxu0 0
    %745 = vmatprep.subr.bf16.mxu0 0
    %746 = vmatpush1.bf16.msra.mxu0 0
    %747 = vmatprep.subr.bf16.mxu0 0
    %748 = vmatpush1.bf16.msra.mxu0 0
    %749 = vmatprep.subr.bf16.mxu0 0
    %750 = vmatpush1.bf16.msra.mxu0 0
    %751 = vmatprep.subr.bf16.mxu0 0
    %752 = vmatpush1.bf16.msra.mxu0 0
    %753 = vmatprep.subr.bf16.mxu0 0
    %754 = vmatpush1.bf16.msra.mxu0 0
    %755 = vmatprep.subr.bf16.mxu0 0
    %756 = vmatpush1.bf16.msra.mxu0 0
    %757 = vmatprep.subr.bf16.mxu0 0
    %758 = vmatpush1.bf16.msra.mxu0 0
    %759 = vmatprep.subr.bf16.mxu0 0
    %760 = vmatpush1.bf16.msra.mxu0 0
    %761 = vmatprep.subr.bf16.mxu0 0
    %762 = vmatpush1.bf16.msra.mxu0 0
    %763 = vmatprep.subr.bf16.mxu0 0
    %764 = vmatpush1.bf16.msra.mxu0 0
    %765 = vmatprep.subr.bf16.mxu0 0
    %766 = vmatpush1.bf16.msra.mxu0 0
    %767 = vmatprep.subr.bf16.mxu0 0
    %768 = vmatpush1.bf16.msra.mxu0 0
    %769 = vmatprep.mubr.bf16.mxu0 0
    %770 = vmatmul.mubr.bf16.gmra.mrb[0].mxu0 %v71
    %v771 = vpop.f32.mrb[0].mxu0
    %v772 = vadd.f32 0.0, %v771
    %v773 = vpop.f32.mrb[0].mxu0
    %v774 = vpop.f32.mrb[0].mxu0
    %v775 = vadd.f32 0.0, %v774
    %v776 = vpop.f32.mrb[0].mxu0
    %777 = vdwg.mxu0
    %v778 = vadd.f32 %v30, %v772
    %v779 = vadd.f32 %v35, %v775
    %780 = vmatprep.subr.bf16.mxu0 0
    %781 = vmatpush1.bf16.msra.mxu0 %v615
    %782 = vmatprep.subr.bf16.mxu0 0
    %783 = vmatpush1.bf16.msra.mxu0 0
    %784 = vmatprep.subr.bf16.mxu0 0
    %785 = vmatpush1.bf16.msra.mxu0 0
    %786 = vmatprep.subr.bf16.mxu0 0
    %787 = vmatpush1.bf16.msra.mxu0 0
    %788 = vmatprep.subr.bf16.mxu0 0
    %789 = vmatpush1.bf16.msra.mxu0 0
    %790 = vmatprep.subr.bf16.mxu0 0
    %791 = vmatpush1.bf16.msra.mxu0 0
    %792 = vmatprep.subr.bf16.mxu0 0
    %793 = vmatpush1.bf16.msra.mxu0 0
    %794 = vmatprep.subr.bf16.mxu0 0
    %795 = vmatpush1.bf16.msra.mxu0 0
    %796 = vmatprep.subr.bf16.mxu0 0
    %797 = vmatpush1.bf16.msra.mxu0 0
    %798 = vmatprep.subr.bf16.mxu0 0
    %799 = vmatpush1.bf16.msra.mxu0 0
    %800 = vmatprep.subr.bf16.mxu0 0
    %801 = vmatpush1.bf16.msra.mxu0 0
    %802 = vmatprep.subr.bf16.mxu0 0
    %803 = vmatpush1.bf16.msra.mxu0 0
    %804 = vmatprep.subr.bf16.mxu0 0
    %805 = vmatpush1.bf16.msra.mxu0 0
    %806 = vmatprep.subr.bf16.mxu0 0
    %807 = vmatpush1.bf16.msra.mxu0 0
    %808 = vmatprep.subr.bf16.mxu0 0
    %809 = vmatpush1.bf16.msra.mxu0 0
    %810 = vmatprep.subr.bf16.mxu0 0
    %811 = vmatpush1.bf16.msra.mxu0 0
    %812 = vmatprep.mubr.bf16.mxu0 0
    %813 = vmatmul.mubr.bf16.gmra.mrb[0].mxu0 %v131
    %v814 = vpop.f32.mrb[0].mxu0
    %v815 = vadd.f32 0.0, %v814
    %v816 = vpop.f32.mrb[0].mxu0
    %v817 = vpop.f32.mrb[0].mxu0
    %v818 = vadd.f32 0.0, %v817
    %v819 = vpop.f32.mrb[0].mxu0
    %820 = vdwg.mxu0
    %v821 = vadd.f32 %v778, %v815
    %v822 = vadd.f32 %v779, %v818
    %s823 = scalar_lea.vmem %s0, 10
    %v824 = vld [vmem:[%s823] sm:$0x3]
    %v826 = vsel %vm73, %v824, 0
    %828 = vmatprep.subr.bf16.mxu0 0
    %829 = vmatpush1.bf16.msra.mxu0 %v826
    %830 = vmatprep.subr.bf16.mxu0 0
    %831 = vmatpush1.bf16.msra.mxu0 0
    %832 = vmatprep.subr.bf16.mxu0 0
    %833 = vmatpush1.bf16.msra.mxu0 0
    %834 = vmatprep.subr.bf16.mxu0 0
    %835 = vmatpush1.bf16.msra.mxu0 0
    %836 = vmatprep.subr.bf16.mxu0 0
    %837 = vmatpush1.bf16.msra.mxu0 0
    %838 = vmatprep.subr.bf16.mxu0 0
    %839 = vmatpush1.bf16.msra.mxu0 0
    %840 = vmatprep.subr.bf16.mxu0 0
    %841 = vmatpush1.bf16.msra.mxu0 0
    %842 = vmatprep.subr.bf16.mxu0 0
    %843 = vmatpush1.bf16.msra.mxu0 0
    %844 = vmatprep.subr.bf16.mxu0 0
    %845 = vmatpush1.bf16.msra.mxu0 0
    %846 = vmatprep.subr.bf16.mxu0 0
    %847 = vmatpush1.bf16.msra.mxu0 0
    %848 = vmatprep.subr.bf16.mxu0 0
    %849 = vmatpush1.bf16.msra.mxu0 0
    %850 = vmatprep.subr.bf16.mxu0 0
    %851 = vmatpush1.bf16.msra.mxu0 0
    %852 = vmatprep.subr.bf16.mxu0 0
    %853 = vmatpush1.bf16.msra.mxu0 0
    %854 = vmatprep.subr.bf16.mxu0 0
    %855 = vmatpush1.bf16.msra.mxu0 0
    %856 = vmatprep.subr.bf16.mxu0 0
    %857 = vmatpush1.bf16.msra.mxu0 0
    %858 = vmatprep.subr.bf16.mxu0 0
    %859 = vmatpush1.bf16.msra.mxu0 0
    %860 = vmatprep.mubr.bf16.mxu0 0
    %861 = vmatmul.mubr.bf16.gmra.mrb[0].mxu0 %v190
    %v862 = vpop.f32.mrb[0].mxu0
    %v863 = vadd.f32 0.0, %v862
    %v864 = vpop.f32.mrb[0].mxu0
    %v865 = vpop.f32.mrb[0].mxu0
    %v866 = vadd.f32 0.0, %v865
    %v867 = vpop.f32.mrb[0].mxu0
    %868 = vdwg.mxu0
    %v869 = vadd.f32 %v821, %v863
    %v870 = vadd.f32 %v822, %v866
    %v871 = vmax.f32 %v869, 0.0
    %v872 = vmax.f32 %v870, 0.0
    %v873 = vpack.c.bf16 %v872, %v871
    %s874 = scalar_lea.vmem %s3, 48
    %v875 = vld [vmem:[%s874] sm:$0xf]
    %v876 = vld [vmem:[%s874 + $0x4] sm:$0xf]
    %v877 = vld [vmem:[%s874 + $0x8] sm:$0xf]
    %v878 = vld [vmem:[%s874 + $0xc] sm:$0xf]
    %v883 = vunpack.c.l.b16 %v875
    %v884 = vunpack.c.l.b16 %v876
    %v885 = vunpack.c.l.b16 %v877
    %v886 = vunpack.c.l.b16 %v878
    %v887 = vpack.c.b16 %v884, %v883
    %v888 = vpack.c.b16 %v886, %v885
    %v890 = vsel %vm255, %v887, 0
    %v893 = vsel %vm255, %v888, 0
    %895 = vmatprep.subr.bf16.mxu0 0
    %896 = vmatpush1.bf16.msra.mxu0 %v873
    %897 = vmatprep.subr.bf16.mxu0 0
    %898 = vmatpush1.bf16.msra.mxu0 0
    %899 = vmatprep.subr.bf16.mxu0 0
    %900 = vmatpush1.bf16.msra.mxu0 0
    %901 = vmatprep.subr.bf16.mxu0 0
    %902 = vmatpush1.bf16.msra.mxu0 0
    %903 = vmatprep.subr.bf16.mxu0 0
    %904 = vmatpush1.bf16.msra.mxu0 0
    %905 = vmatprep.subr.bf16.mxu0 0
    %906 = vmatpush1.bf16.msra.mxu0 0
    %907 = vmatprep.subr.bf16.mxu0 0
    %908 = vmatpush1.bf16.msra.mxu0 0
    %909 = vmatprep.subr.bf16.mxu0 0
    %910 = vmatpush1.bf16.msra.mxu0 0
    %911 = vmatprep.subr.bf16.mxu0 0
    %912 = vmatpush1.bf16.msra.mxu0 0
    %913 = vmatprep.subr.bf16.mxu0 0
    %914 = vmatpush1.bf16.msra.mxu0 0
    %915 = vmatprep.subr.bf16.mxu0 0
    %916 = vmatpush1.bf16.msra.mxu0 0
    %917 = vmatprep.subr.bf16.mxu0 0
    %918 = vmatpush1.bf16.msra.mxu0 0
    %919 = vmatprep.subr.bf16.mxu0 0
    %920 = vmatpush1.bf16.msra.mxu0 0
    %921 = vmatprep.subr.bf16.mxu0 0
    %922 = vmatpush1.bf16.msra.mxu0 0
    %923 = vmatprep.subr.bf16.mxu0 0
    %924 = vmatpush1.bf16.msra.mxu0 0
    %925 = vmatprep.subr.bf16.mxu0 0
    %926 = vmatpush1.bf16.msra.mxu0 0
    %927 = vmatprep.mubr.bf16.mxu0 0
    %928 = vmatmul.mubr.bf16.gmra.mrb[0].mxu0 %v890
    %v929 = vpop.f32.mrb[0].mxu0
    %v930 = vadd.f32 0.0, %v929
    %v931 = vpop.f32.mrb[0].mxu0
    %v932 = vpop.f32.mrb[0].mxu0
    %v933 = vadd.f32 0.0, %v932
    %v934 = vpop.f32.mrb[0].mxu0
    %935 = vmatprep.mubr.bf16.mxu0 0
    %936 = vmatmul.mubr.bf16.gmra.mrb[0].mxu0 %v893
    %v937 = vpop.f32.mrb[0].mxu0
    %v938 = vadd.f32 0.0, %v937
    %v939 = vpop.f32.mrb[0].mxu0
    %v940 = vpop.f32.mrb[0].mxu0
    %v941 = vadd.f32 0.0, %v940
    %v942 = vpop.f32.mrb[0].mxu0
    %943 = vdwg.mxu0
    %v944 = vadd.f32 %v733, %v930
    %v945 = vadd.f32 %v734, %v933
    %v946 = vadd.f32 %v735, %v938
    %v947 = vadd.f32 %v736, %v941
    %948 = vmatprep.subr.bf16.mxu0 0
    %949 = vmatpush1.bf16.msra.mxu0 %v615
    %950 = vmatprep.subr.bf16.mxu0 0
    %951 = vmatpush1.bf16.msra.mxu0 0
    %952 = vmatprep.subr.bf16.mxu0 0
    %953 = vmatpush1.bf16.msra.mxu0 0
    %954 = vmatprep.subr.bf16.mxu0 0
    %955 = vmatpush1.bf16.msra.mxu0 0
    %956 = vmatprep.subr.bf16.mxu0 0
    %957 = vmatpush1.bf16.msra.mxu0 0
    %958 = vmatprep.subr.bf16.mxu0 0
    %959 = vmatpush1.bf16.msra.mxu0 0
    %960 = vmatprep.subr.bf16.mxu0 0
    %961 = vmatpush1.bf16.msra.mxu0 0
    %962 = vmatprep.subr.bf16.mxu0 0
    %963 = vmatpush1.bf16.msra.mxu0 0
    %964 = vmatprep.subr.bf16.mxu0 0
    %965 = vmatpush1.bf16.msra.mxu0 0
    %966 = vmatprep.subr.bf16.mxu0 0
    %967 = vmatpush1.bf16.msra.mxu0 0
    %968 = vmatprep.subr.bf16.mxu0 0
    %969 = vmatpush1.bf16.msra.mxu0 0
    %970 = vmatprep.subr.bf16.mxu0 0
    %971 = vmatpush1.bf16.msra.mxu0 0
    %972 = vmatprep.subr.bf16.mxu0 0
    %973 = vmatpush1.bf16.msra.mxu0 0
    %974 = vmatprep.subr.bf16.mxu0 0
    %975 = vmatpush1.bf16.msra.mxu0 0
    %976 = vmatprep.subr.bf16.mxu0 0
    %977 = vmatpush1.bf16.msra.mxu0 0
    %978 = vmatprep.subr.bf16.mxu0 0
    %979 = vmatpush1.bf16.msra.mxu0 0
    %980 = vmatprep.mubr.bf16.mxu0 0
    %981 = vmatmul.mubr.bf16.gmra.mrb[0].mxu0 %v71
    %v982 = vpop.f32.mrb[0].mxu0
    %v983 = vadd.f32 0.0, %v982
    %v984 = vpop.f32.mrb[0].mxu0
    %v985 = vpop.f32.mrb[0].mxu0
    %v986 = vadd.f32 0.0, %v985
    %v987 = vpop.f32.mrb[0].mxu0
    %988 = vdwg.mxu0
    %v989 = vadd.f32 %v30, %v983
    %v990 = vadd.f32 %v35, %v986
    %991 = vmatprep.subr.bf16.mxu0 0
    %992 = vmatpush1.bf16.msra.mxu0 %v826
    %993 = vmatprep.subr.bf16.mxu0 0
    %994 = vmatpush1.bf16.msra.mxu0 0
    %995 = vmatprep.subr.bf16.mxu0 0
    %996 = vmatpush1.bf16.msra.mxu0 0
    %997 = vmatprep.subr.bf16.mxu0 0
    %998 = vmatpush1.bf16.msra.mxu0 0
    %999 = vmatprep.subr.bf16.mxu0 0
    %1000 = vmatpush1.bf16.msra.mxu0 0
    %1001 = vmatprep.subr.bf16.mxu0 0
    %1002 = vmatpush1.bf16.msra.mxu0 0
    %1003 = vmatprep.subr.bf16.mxu0 0
    %1004 = vmatpush1.bf16.msra.mxu0 0
    %1005 = vmatprep.subr.bf16.mxu0 0
    %1006 = vmatpush1.bf16.msra.mxu0 0
    %1007 = vmatprep.subr.bf16.mxu0 0
    %1008 = vmatpush1.bf16.msra.mxu0 0
    %1009 = vmatprep.subr.bf16.mxu0 0
    %1010 = vmatpush1.bf16.msra.mxu0 0
    %1011 = vmatprep.subr.bf16.mxu0 0
    %1012 = vmatpush1.bf16.msra.mxu0 0
    %1013 = vmatprep.subr.bf16.mxu0 0
    %1014 = vmatpush1.bf16.msra.mxu0 0
    %1015 = vmatprep.subr.bf16.mxu0 0
    %1016 = vmatpush1.bf16.msra.mxu0 0
    %1017 = vmatprep.subr.bf16.mxu0 0
    %1018 = vmatpush1.bf16.msra.mxu0 0
    %1019 = vmatprep.subr.bf16.mxu0 0
    %1020 = vmatpush1.bf16.msra.mxu0 0
    %1021 = vmatprep.subr.bf16.mxu0 0
    %1022 = vmatpush1.bf16.msra.mxu0 0
    %1023 = vmatprep.mubr.bf16.mxu0 0
    %1024 = vmatmul.mubr.bf16.gmra.mrb[0].mxu0 %v131
    %v1025 = vpop.f32.mrb[0].mxu0
    %v1026 = vadd.f32 0.0, %v1025
    %v1027 = vpop.f32.mrb[0].mxu0
    %v1028 = vpop.f32.mrb[0].mxu0
    %v1029 = vadd.f32 0.0, %v1028
    %v1030 = vpop.f32.mrb[0].mxu0
    %1031 = vdwg.mxu0
    %v1032 = vadd.f32 %v989, %v1026
    %v1033 = vadd.f32 %v990, %v1029
    %s1034 = scalar_lea.vmem %s0, 12
    %v1035 = vld [vmem:[%s1034] sm:$0x3]
    %v1037 = vsel %vm73, %v1035, 0
    %1039 = vmatprep.subr.bf16.mxu0 0
    %1040 = vmatpush1.bf16.msra.mxu0 %v1037
    %1041 = vmatprep.subr.bf16.mxu0 0
    %1042 = vmatpush1.bf16.msra.mxu0 0
    %1043 = vmatprep.subr.bf16.mxu0 0
    %1044 = vmatpush1.bf16.msra.mxu0 0
    %1045 = vmatprep.subr.bf16.mxu0 0
    %1046 = vmatpush1.bf16.msra.mxu0 0
    %1047 = vmatprep.subr.bf16.mxu0 0
    %1048 = vmatpush1.bf16.msra.mxu0 0
    %1049 = vmatprep.subr.bf16.mxu0 0
    %1050 = vmatpush1.bf16.msra.mxu0 0
    %1051 = vmatprep.subr.bf16.mxu0 0
    %1052 = vmatpush1.bf16.msra.mxu0 0
    %1053 = vmatprep.subr.bf16.mxu0 0
    %1054 = vmatpush1.bf16.msra.mxu0 0
    %1055 = vmatprep.subr.bf16.mxu0 0
    %1056 = vmatpush1.bf16.msra.mxu0 0
    %1057 = vmatprep.subr.bf16.mxu0 0
    %1058 = vmatpush1.bf16.msra.mxu0 0
    %1059 = vmatprep.subr.bf16.mxu0 0
    %1060 = vmatpush1.bf16.msra.mxu0 0
    %1061 = vmatprep.subr.bf16.mxu0 0
    %1062 = vmatpush1.bf16.msra.mxu0 0
    %1063 = vmatprep.subr.bf16.mxu0 0
    %1064 = vmatpush1.bf16.msra.mxu0 0
    %1065 = vmatprep.subr.bf16.mxu0 0
    %1066 = vmatpush1.bf16.msra.mxu0 0
    %1067 = vmatprep.subr.bf16.mxu0 0
    %1068 = vmatpush1.bf16.msra.mxu0 0
    %1069 = vmatprep.subr.bf16.mxu0 0
    %1070 = vmatpush1.bf16.msra.mxu0 0
    %1071 = vmatprep.mubr.bf16.mxu0 0
    %1072 = vmatmul.mubr.bf16.gmra.mrb[0].mxu0 %v190
    %v1073 = vpop.f32.mrb[0].mxu0
    %v1074 = vadd.f32 0.0, %v1073
    %v1075 = vpop.f32.mrb[0].mxu0
    %v1076 = vpop.f32.mrb[0].mxu0
    %v1077 = vadd.f32 0.0, %v1076
    %v1078 = vpop.f32.mrb[0].mxu0
    %1079 = vdwg.mxu0
    %v1080 = vadd.f32 %v1032, %v1074
    %v1081 = vadd.f32 %v1033, %v1077
    %v1082 = vmax.f32 %v1080, 0.0
    %v1083 = vmax.f32 %v1081, 0.0
    %v1084 = vpack.c.bf16 %v1083, %v1082
    %s1085 = scalar_lea.vmem %s3, 64
    %v1086 = vld [vmem:[%s1085] sm:$0xf]
    %v1087 = vld [vmem:[%s1085 + $0x4] sm:$0xf]
    %v1088 = vld [vmem:[%s1085 + $0x8] sm:$0xf]
    %v1089 = vld [vmem:[%s1085 + $0xc] sm:$0xf]
    %v1094 = vunpack.c.l.b16 %v1086
    %v1095 = vunpack.c.l.b16 %v1087
    %v1096 = vunpack.c.l.b16 %v1088
    %v1097 = vunpack.c.l.b16 %v1089
    %v1098 = vpack.c.b16 %v1095, %v1094
    %v1099 = vpack.c.b16 %v1097, %v1096
    %v1101 = vsel %vm255, %v1098, 0
    %v1104 = vsel %vm255, %v1099, 0
    %1106 = vmatprep.subr.bf16.mxu0 0
    %1107 = vmatpush1.bf16.msra.mxu0 %v1084
    %1108 = vmatprep.subr.bf16.mxu0 0
    %1109 = vmatpush1.bf16.msra.mxu0 0
    %1110 = vmatprep.subr.bf16.mxu0 0
    %1111 = vmatpush1.bf16.msra.mxu0 0
    %1112 = vmatprep.subr.bf16.mxu0 0
    %1113 = vmatpush1.bf16.msra.mxu0 0
    %1114 = vmatprep.subr.bf16.mxu0 0
    %1115 = vmatpush1.bf16.msra.mxu0 0
    %1116 = vmatprep.subr.bf16.mxu0 0
    %1117 = vmatpush1.bf16.msra.mxu0 0
    %1118 = vmatprep.subr.bf16.mxu0 0
    %1119 = vmatpush1.bf16.msra.mxu0 0
    %1120 = vmatprep.subr.bf16.mxu0 0
    %1121 = vmatpush1.bf16.msra.mxu0 0
    %1122 = vmatprep.subr.bf16.mxu0 0
    %1123 = vmatpush1.bf16.msra.mxu0 0
    %1124 = vmatprep.subr.bf16.mxu0 0
    %1125 = vmatpush1.bf16.msra.mxu0 0
    %1126 = vmatprep.subr.bf16.mxu0 0
    %1127 = vmatpush1.bf16.msra.mxu0 0
    %1128 = vmatprep.subr.bf16.mxu0 0
    %1129 = vmatpush1.bf16.msra.mxu0 0
    %1130 = vmatprep.subr.bf16.mxu0 0
    %1131 = vmatpush1.bf16.msra.mxu0 0
    %1132 = vmatprep.subr.bf16.mxu0 0
    %1133 = vmatpush1.bf16.msra.mxu0 0
    %1134 = vmatprep.subr.bf16.mxu0 0
    %1135 = vmatpush1.bf16.msra.mxu0 0
    %1136 = vmatprep.subr.bf16.mxu0 0
    %1137 = vmatpush1.bf16.msra.mxu0 0
    %1138 = vmatprep.mubr.bf16.mxu0 0
    %1139 = vmatmul.mubr.bf16.gmra.mrb[0].mxu0 %v1101
    %v1140 = vpop.f32.mrb[0].mxu0
    %v1141 = vadd.f32 0.0, %v1140
    %v1142 = vpop.f32.mrb[0].mxu0
    %v1143 = vpop.f32.mrb[0].mxu0
    %v1144 = vadd.f32 0.0, %v1143
    %v1145 = vpop.f32.mrb[0].mxu0
    %1146 = vmatprep.mubr.bf16.mxu0 0
    %1147 = vmatmul.mubr.bf16.gmra.mrb[0].mxu0 %v1104
    %v1148 = vpop.f32.mrb[0].mxu0
    %v1149 = vadd.f32 0.0, %v1148
    %v1150 = vpop.f32.mrb[0].mxu0
    %v1151 = vpop.f32.mrb[0].mxu0
    %v1152 = vadd.f32 0.0, %v1151
    %v1153 = vpop.f32.mrb[0].mxu0
    %1154 = vdwg.mxu0
    %v1155 = vadd.f32 %v944, %v1141
    %v1156 = vadd.f32 %v945, %v1144
    %v1157 = vadd.f32 %v946, %v1149
    %v1158 = vadd.f32 %v947, %v1152
    %v1159 = vmax.f32 %v1155, 0.0
    %v1160 = vmax.f32 %v1156, 0.0
    %v1161 = vmax.f32 %v1157, 0.0
    %v1162 = vmax.f32 %v1158, 0.0
    %v1163 = vld [vmem:[%s5] sm:$0xff]
    %v1164 = vld [vmem:[%s5 + $0x8] sm:$0xff]
    %v1165 = vld [vmem:[%s5 + $0x10] sm:$0xff]
    %v1166 = vld [vmem:[%s5 + $0x18] sm:$0xff]
    %v1167 = vmul.f32 %v1159, %v1163
    %v1168 = vmul.f32 %v1160, %v1164
    %v1169 = vmul.f32 %v1161, %v1165
    %v1170 = vmul.f32 %v1162, %v1166
    %v1171 = vadd.f32 %v1167, %v1168
    %v1172 = vadd.f32 %v1171, %v1169
    %v1173 = vadd.f32 %v1172, %v1170
    %v1174 = vrot.slane %v1173, 4
    %v1175 = vadd.f32 %v1173, %v1174
    %v1176 = vrot.slane %v1175, 2
    %v1177 = vadd.f32 %v1175, %v1176
    %v1178 = vrot.slane %v1177, 1
    %v1179 = vadd.f32 %v1177, %v1178
    %1180 = vst [vmem:[#allocation2] sm:$0x1] %v1179
    // Predicated region
    $region26: #{tpu_custom_call.1} parent=1 // pred_check
      _
    $region27: #{tpu_custom_call.1} parent=1 // pred_check_branch
      %1182 = sbr.rel (0) target = $region29
    $region28: #{tpu_custom_call.1} parent=1 // pred_region
      %s1184 = ssub.s32 16, 16
      %1185 = vsyncadd [#allocation3], %s1184
      %s1187 = sshll.u32 [#allocation2], 4
      %s1188 = int_to_ptr.vmem [resolvable:$true] %s1187
      %1190 = dma.vmem_to_hbm [thread:$0]  %s1188, 16, %s6, [#allocation3]
    $region29: #{tpu_custom_call.1} parent=1 // pred_fallthru
      _
    // Predicated region
    $region30: #{tpu_custom_call.1} parent=1 // pred_check
      _
    $region31: #{tpu_custom_call.1} parent=1 // pred_check_branch
      %1192 = sbr.rel (0) target = $region33
    $region32: #{tpu_custom_call.1} parent=1 // pred_region
      %1193 = dma.done [#allocation3], 16
    $region33: #{tpu_custom_call.1} parent=1 // pred_fallthru
      _
    %1194 = vsyncpa [#allocation3], 1

</llo_original>
